<compile_context>
chip_gen: v6e
topology: v6e:2x2x1
jax: 0.10.0
libtpu: 0.0.40
codegen_flags: <defaults>
</compile_context>

<pallas_src>
import functools

import jax
import jax.numpy as jnp
from jax import lax
from jax.experimental import pallas as pl
from jax.experimental.pallas import tpu as pltpu


def _round_up(x, m):
    return ((x + m - 1) // m) * m


# ----------------------------------------------------------------------------
# Fused EdgeTransition kernel (tiled over the edge dimension E)
# ----------------------------------------------------------------------------
def _fused_edge_kernel(
    idx_ref,                        # [T, 2] int32  (edge_index, transposed)
    e_ref,                          # [T, De]       edge_embed tile
    w1e_ref,                        # [De, H]       W1 rows for the edge block
    nhw1a_ref, nhw1b_ref,           # [N, H]        nh @ W1 node-row blocks
    b1_ref,                         # [1, H]
    w2_ref, b2_ref,                 # [H, H], [1, H]
    wf_ref,                         # [H, Eo_pad]   full final weight (lane-padded)
    nhwfa_ref, nhwfb_ref,           # [N, Eo_pad]   nh @ Wf node-row blocks
    bf_ref,                         # [1, Eo_pad]
    g_ref, be_ref,                  # [1, Eo_pad]   LayerNorm gamma / beta (padded)
    o_ref,                          # [T, Eo_pad]   output tile
    *, eo_real: int, n_nodes: int, de: int, eps: float):
    f32 = jnp.float32
    cdt = e_ref.dtype              # storage dtype for MXU operands (bf16 or f32)

    # --- in-VMEM "gather" of the folded node products via one-hot matmuls.
    # TODO(synk): for node counts beyond a few hundred, switch to a scalar-
    # prefetch / pl.Element DMA row gather; the one-hot path is O(tile_e * N).
    idx = idx_ref[...]                                       # [T, 2] int32
    iota_n = lax.broadcasted_iota(jnp.int32, (idx.shape[0], n_nodes), 1)
    oh_i = (idx[:, 0:1] == iota_n).astype(cdt)               # [T, N]
    oh_j = (idx[:, 1:2] == iota_n).astype(cdt)
    e = e_ref[...]                                           # [T, De]

    # x = cat([e, nh[i], nh[j]]) is never materialized: every x @ W is the sum
    # of an edge-row matmul plus two one-hot matmuls against precomputed nh@W.
    h = (jnp.dot(e, w1e_ref[...], preferred_element_type=f32)
         + jnp.dot(oh_i, nhw1a_ref[...], preferred_element_type=f32)
         + jnp.dot(oh_j, nhw1b_ref[...], preferred_element_type=f32)
         + b1_ref[...])
    h = jnp.maximum(h, 0.0)
    h = jnp.dot(h.astype(cdt), w2_ref[...], preferred_element_type=f32) + b2_ref[...]
    h = jnp.maximum(h, 0.0)

    # final_layer(trunk(x) + x) == h @ Wf + x @ Wf + bf.  The residual's edge
    # block reuses a static sublane-aligned slice of the resident wf (no
    # duplicate weight input).
    wf_full = wf_ref[...]                                    # [H, Eo_pad]
    y = (jnp.dot(h.astype(cdt), wf_full, preferred_element_type=f32)
         + jnp.dot(e, wf_full[:de, :], preferred_element_type=f32)
         + jnp.dot(oh_i, nhwfa_ref[...], preferred_element_type=f32)
         + jnp.dot(oh_j, nhwfb_ref[...], preferred_element_type=f32)
         + bf_ref[...])                                      # [T, Eo_pad]

    # LayerNorm over the real eo_real features (PyTorch eps default 1e-5).
    # Padded lanes of y are exactly zero (wf/bf zero-padded), so whole-row sums
    # equal sums over the real features; single-pass variance, f32 math.
    inv = 1.0 / float(eo_real)
    mean = jnp.sum(y, axis=-1, keepdims=True) * inv
    msq = jnp.sum(y * y, axis=-1, keepdims=True) * inv
    var = jnp.maximum(msq - mean * mean, 0.0)
    out = (y - mean) * lax.rsqrt(var + eps)
    out = out * g_ref[...] + be_ref[...]                     # padded lanes -> 0
    o_ref[...] = out.astype(o_ref.dtype)


# ----------------------------------------------------------------------------
# Wrapper: weight folding / lane padding / E-tiling, one pallas_call
# ----------------------------------------------------------------------------
def edge_transition_forward(params, node_embed, edge_embed, edge_index,
                            *, tile_e=512, storage_dtype=jnp.bfloat16,
                            out_dtype=None, ensure_two_grid_steps=True):
    E, De = edge_embed.shape
    N, Dn = node_embed.shape
    Db = params["w0"].shape[1]
    H = params["w1"].shape[0]
    Eo = params["wf"].shape[1]
    assert H == De + 2 * Db

    cdt = jnp.dtype(storage_dtype if storage_dtype is not None
                    else edge_embed.dtype)
    odt = jnp.dtype(out_dtype if out_dtype is not None else edge_embed.dtype)

    # ---- node initial embedding (tiny [N,Dn]x[Dn,Db] matmul, done once in XLA)
    nh = node_embed.astype(jnp.float32) @ params["w0"] + params["b0"]   # [N, Db]

    # ---- lane-dense output: pad final layer / LayerNorm params to 128 lanes --
    Eo_pad = _round_up(Eo, 128)
    pad_o = Eo_pad - Eo
    wf_p = jnp.pad(params["wf"], ((0, 0), (0, pad_o)))
    bf_p = jnp.pad(params["bf"], ((0, 0), (0, pad_o)))
    g_p = jnp.pad(params["gamma"], ((0, 0), (0, pad_o)))
    be_p = jnp.pad(params["beta"], ((0, 0), (0, pad_o)))

    # ---- fold the node_h gather into the weights:  nh[i] @ W == oh_i @ (nh @ W)
    w1 = params["w1"]
    w1e = w1[:De]                                    # [De, H]
    nhw1a = nh @ w1[De:De + Db]                      # [N, H]
    nhw1b = nh @ w1[De + Db:]                        # [N, H]
    nhwfa = nh @ wf_p[De:De + Db]                    # [N, Eo_pad]
    nhwfb = nh @ wf_p[De + Db:]                      # [N, Eo_pad]

    # ---- E tiling: alignment follows sub-32-bit sublane packing ---------------
    row_align = 8
    if cdt.itemsize == 2 or odt.itemsize == 2:
        row_align = 16
    if cdt.itemsize == 1 or odt.itemsize == 1:
        row_align = 32
    tile_e = max(row_align, min(int(tile_e), _round_up(E, row_align)))
    if ensure_two_grid_steps and E > row_align:
        # Cap the tile so the grid has >= 2 steps: on v7x the "parallel" grid
        # axis is sharded across 2 TensorCores; grid=(1,) idles one core.
        tile_e = min(tile_e, _round_up(pl.cdiv(E, 2), row_align))
    tile_e = _round_up(tile_e, row_align)
    E_pad = _round_up(E, tile_e)
    grid = (E_pad // tile_e,)

    edge_p = jnp.pad(edge_embed, ((0, E_pad - E), (0, 0))).astype(cdt)
    idx_t = jnp.pad(edge_index.astype(jnp.int32).T, ((0, E_pad - E), (0, 0)))

    # ---- storage dtype for MXU operands (biases / LN params stay f32) ---------
    w1e_c = w1e.astype(cdt)
    nhw1a_c, nhw1b_c = nhw1a.astype(cdt), nhw1b.astype(cdt)
    w2_c = params["w2"].astype(cdt)
    wf_c = wf_p.astype(cdt)
    nhwfa_c, nhwfb_c = nhwfa.astype(cdt), nhwfb.astype(cdt)

    # ---- explicit VMEM budget (v7x: 64 MiB physical / 32 MiB default scoped) --
    per_step = tile_e * (2 * 4 + De * cdt.itemsize + Eo_pad * odt.itemsize)
    resident = ((De * H + 2 * N * H + H * H + H * Eo_pad + 2 * N * Eo_pad)
                * cdt.itemsize + (2 * H + 3 * Eo_pad) * 4)
    vmem_limit = int(min(max(2 * (2 * per_step + 2 * resident) + (4 << 20),
                             16 << 20), 64 << 20))

    res = lambda i: (0, 0)        # resident (weights / folded node products)
    row = lambda i: (i, 0)        # tiled over edges

    kernel = functools.partial(_fused_edge_kernel,
                               eo_real=Eo, n_nodes=N, de=De, eps=1e-5)

    out = pl.pallas_call(
        kernel,
        out_shape=jax.ShapeDtypeStruct((E_pad, Eo_pad), odt),
        grid_spec=pltpu.PrefetchScalarGridSpec(
            num_scalar_prefetch=0,
            grid=grid,
            in_specs=[
                pl.BlockSpec((tile_e, 2), row),      # edge_index (transposed)
                pl.BlockSpec((tile_e, De), row),     # edge_embed tile
                pl.BlockSpec((De, H), res),          # w1 rows: edge block
                pl.BlockSpec((N, H), res),           # nh @ w1 rows: node_h[i]
                pl.BlockSpec((N, H), res),           # nh @ w1 rows: node_h[j]
                pl.BlockSpec((1, H), res),           # b1
                pl.BlockSpec((H, H), res),           # w2
                pl.BlockSpec((1, H), res),           # b2
                pl.BlockSpec((H, Eo_pad), res),      # wf (full, also sliced)
                pl.BlockSpec((N, Eo_pad), res),      # nh @ wf rows: node_h[i]
                pl.BlockSpec((N, Eo_pad), res),      # nh @ wf rows: node_h[j]
                pl.BlockSpec((1, Eo_pad), res),      # bf
                pl.BlockSpec((1, Eo_pad), res),      # gamma
                pl.BlockSpec((1, Eo_pad), res),      # beta
            ],
            out_specs=pl.BlockSpec((tile_e, Eo_pad), row),
        ),
        compiler_params=pltpu.CompilerParams(
            dimension_semantics=("parallel",),
            vmem_limit_bytes=vmem_limit),
    )(idx_t, edge_p,
      w1e_c, nhw1a_c, nhw1b_c, params["b1"],
      w2_c, params["b2"],
      wf_c, nhwfa_c, nhwfb_c, bf_p,
      g_p, be_p)

    # TODO(synk): if the consumer can take the padded [E_pad, Eo_pad] buffer,
    # skip this slice (it is an extra read+write pass over the largest stream).
    return out[:E, :Eo]


# ----------------------------------------------------------------------------
# Deterministic parameter init
# ----------------------------------------------------------------------------
def init_params(key, node_attr_size, edge_embed_in, edge_embed_out,
                node_dilation=2):
    bias_embed = node_attr_size // node_dilation
    hidden = bias_embed * 2 + edge_embed_in

    keys = jax.random.split(key, 4)

    def lin(k, fan_in, fan_out, scale=1.0):
        # He-like init; openfold init='final' would be zeros — we use a small
        # nonzero scale on wf on purpose so the test output is non-trivial.
        return jax.random.normal(k, (fan_in, fan_out), jnp.float32) * (
            scale / jnp.sqrt(jnp.float32(fan_in)))

    params = {
        "w0": lin(keys[0], node_attr_size, bias_embed),
        "b0": jnp.zeros((1, bias_embed), jnp.float32),
        "w1": lin(keys[1], hidden, hidden),
        "b1": jnp.zeros((1, hidden), jnp.float32),
        "w2": lin(keys[2], hidden, hidden),
        "b2": jnp.zeros((1, hidden), jnp.float32),
        "wf": lin(keys[3], hidden, edge_embed_out, scale=0.1),
        "bf": jnp.zeros((1, edge_embed_out), jnp.float32),
        "gamma": jnp.ones((1, edge_embed_out), jnp.float32),
        "beta": jnp.zeros((1, edge_embed_out), jnp.float32),
    }
    return params, hidden, bias_embed


# ----------------------------------------------------------------------------
# Pure-JAX reference for sanity checking
# ----------------------------------------------------------------------------
def reference_forward(params, node_embed, edge_embed, edge_index):
    i, j = edge_index[0], edge_index[1]
    nh = node_embed @ params["w0"] + params["b0"]
    x = jnp.concatenate([edge_embed, nh[i], nh[j]], axis=-1)
    h = jnp.maximum(x @ params["w1"] + params["b1"], 0.0)
    h = jnp.maximum(h @ params["w2"] + params["b2"], 0.0)
    y = (h + x) @ params["wf"] + params["bf"]
    mean = jnp.mean(y, -1, keepdims=True)
    var = jnp.mean((y - mean) ** 2, -1, keepdims=True)
    y = (y - mean) / jnp.sqrt(var + 1e-5)
    return y * params["gamma"] + params["beta"]


if __name__ == "__main__":
    # node_attr_size=32, node_dilation=2 -> bias_embed=16, edge_embed_in=32
    # -> hidden=64, edge_embed_out=32.  N=16 nodes, E=200 edges (not a multiple
    # of the tile, exercising remainder padding and the grid>=2 cap).
    node_attr_size = 32
    edge_embed_in = 32
    edge_embed_out = 32
    N, E = 16, 200

    key = jax.random.PRNGKey(0)
    k_params, k_node, k_edge, k_idx = jax.random.split(key, 4)

    params, hidden, bias_embed = init_params(
        k_params, node_attr_size, edge_embed_in, edge_embed_out)

    node_embed = jax.random.normal(k_node, (N, node_attr_size), jnp.float32)
    edge_embed = jax.random.normal(k_edge, (E, edge_embed_in), jnp.float32)
    edge_index = jax.random.randint(k_idx, (2, E), 0, N, dtype=jnp.int32)

    ref = reference_forward(params, node_embed, edge_embed, edge_index)

    # --- f32 storage path (tight tolerance vs. reference) ---
    fwd_f32 = jax.jit(functools.partial(
        edge_transition_forward, tile_e=128, storage_dtype=jnp.float32,
        out_dtype=jnp.float32))
    out = jax.block_until_ready(fwd_f32(params, node_embed, edge_embed, edge_index))
    assert out.shape == (E, edge_embed_out)
    assert jnp.allclose(out, ref, atol=5e-4, rtol=5e-4)

    # --- default path: bf16 storage for MXU operands, f32 math/accumulation ---
    fwd_def = jax.jit(edge_transition_forward)
    out_def = jax.block_until_ready(
        fwd_def(params, node_embed, edge_embed, edge_index))
    assert out_def.shape == (E, edge_embed_out)
    assert jnp.allclose(out_def, ref, atol=1.5e-1, rtol=1.5e-1)

    print("KERNEL_OK")
</pallas_src>

<mosaic_0001>
module attributes {stable_mosaic.version = 11 : i64} {
  func.func @_fused_edge_kernel(%arg0: i32, %arg1: memref<104x2xi32, #tpu.memory_space<vmem>>, %arg2: memref<104x32xf32, #tpu.memory_space<vmem>>, %arg3: memref<32x64xf32, #tpu.memory_space<vmem>>, %arg4: memref<16x64xf32, #tpu.memory_space<vmem>>, %arg5: memref<16x64xf32, #tpu.memory_space<vmem>>, %arg6: memref<1x64xf32, #tpu.memory_space<vmem>>, %arg7: memref<64x64xf32, #tpu.memory_space<vmem>>, %arg8: memref<1x64xf32, #tpu.memory_space<vmem>>, %arg9: memref<64x128xf32, #tpu.memory_space<vmem>>, %arg10: memref<16x128xf32, #tpu.memory_space<vmem>>, %arg11: memref<16x128xf32, #tpu.memory_space<vmem>>, %arg12: memref<1x128xf32, #tpu.memory_space<vmem>>, %arg13: memref<1x128xf32, #tpu.memory_space<vmem>>, %arg14: memref<1x128xf32, #tpu.memory_space<vmem>>, %arg15: memref<104x128xf32, #tpu.memory_space<vmem>>) attributes {dimension_semantics = [#tpu.dimension_semantics<parallel>], iteration_bounds = array<i64: 2>, scalar_prefetch = 0 : i64, scratch_operands = 0 : i64, tpu.core_type = #tpu.core_type<tc>, window_params = [{transform_indices = @transform_0, window_bounds = array<i64: 104, 2>}, {transform_indices = @transform_1, window_bounds = array<i64: 104, 32>}, {pipeline_mode = #tpu.pipeline_mode<synchronous>, transform_indices = @transform_2, window_bounds = array<i64: 32, 64>}, {pipeline_mode = #tpu.pipeline_mode<synchronous>, transform_indices = @transform_3, window_bounds = array<i64: 16, 64>}, {pipeline_mode = #tpu.pipeline_mode<synchronous>, transform_indices = @transform_4, window_bounds = array<i64: 16, 64>}, {pipeline_mode = #tpu.pipeline_mode<synchronous>, transform_indices = @transform_5, window_bounds = array<i64: 1, 64>}, {pipeline_mode = #tpu.pipeline_mode<synchronous>, transform_indices = @transform_6, window_bounds = array<i64: 64, 64>}, {pipeline_mode = #tpu.pipeline_mode<synchronous>, transform_indices = @transform_7, window_bounds = array<i64: 1, 64>}, {pipeline_mode = #tpu.pipeline_mode<synchronous>, transform_indices = @transform_8, window_bounds = array<i64: 64, 128>}, {pipeline_mode = #tpu.pipeline_mode<synchronous>, transform_indices = @transform_9, window_bounds = array<i64: 16, 128>}, {pipeline_mode = #tpu.pipeline_mode<synchronous>, transform_indices = @transform_10, window_bounds = array<i64: 16, 128>}, {pipeline_mode = #tpu.pipeline_mode<synchronous>, transform_indices = @transform_11, window_bounds = array<i64: 1, 128>}, {pipeline_mode = #tpu.pipeline_mode<synchronous>, transform_indices = @transform_12, window_bounds = array<i64: 1, 128>}, {pipeline_mode = #tpu.pipeline_mode<synchronous>, transform_indices = @transform_13, window_bounds = array<i64: 1, 128>}, {transform_indices = @transform_14, window_bounds = array<i64: 104, 128>}]} {
    %c0 = arith.constant 0 : index
    %c0_0 = arith.constant 0 : index
    %0 = vector.load %arg1[%c0, %c0_0] : memref<104x2xi32, #tpu.memory_space<vmem>>, vector<104x2xi32>
    %1 = tpu.iota {dimensions = array<i32: 1>} : vector<104x16xi32>
    %2 = vector.extract_strided_slice %0 {offsets = [0, 0], sizes = [104, 1], strides = [1, 1]} : vector<104x2xi32> to vector<104x1xi32>
    %3 = vector.broadcast %2 : vector<104x1xi32> to vector<104x16xi32>
    %4 = arith.cmpi eq, %3, %1 : vector<104x16xi32>
    %5 = arith.extui %4 : vector<104x16xi1> to vector<104x16xi32>
    %6 = arith.sitofp %5 : vector<104x16xi32> to vector<104x16xf32>
    %7 = vector.extract_strided_slice %0 {offsets = [0, 1], sizes = [104, 1], strides = [1, 1]} : vector<104x2xi32> to vector<104x1xi32>
    %8 = vector.broadcast %7 : vector<104x1xi32> to vector<104x16xi32>
    %9 = arith.cmpi eq, %8, %1 : vector<104x16xi32>
    %10 = arith.extui %9 : vector<104x16xi1> to vector<104x16xi32>
    %11 = arith.sitofp %10 : vector<104x16xi32> to vector<104x16xf32>
    %c0_1 = arith.constant 0 : index
    %c0_2 = arith.constant 0 : index
    %12 = vector.load %arg2[%c0_1, %c0_2] : memref<104x32xf32, #tpu.memory_space<vmem>>, vector<104x32xf32>
    %c0_3 = arith.constant 0 : index
    %c0_4 = arith.constant 0 : index
    %13 = vector.load %arg3[%c0_3, %c0_4] : memref<32x64xf32, #tpu.memory_space<vmem>>, vector<32x64xf32>
    %cst = arith.constant dense<0.000000e+00> : vector<104x64xf32>
    %14 = tpu.matmul %12, %13, %cst {dimension_numbers = #tpu.dot_dimension_numbers<[1], [0], [0], [1], [0, 0, 1, 1], [], []>} : vector<104x32xf32>, vector<32x64xf32>, vector<104x64xf32> -> vector<104x64xf32>
    %c0_5 = arith.constant 0 : index
    %c0_6 = arith.constant 0 : index
    %15 = vector.load %arg4[%c0_5, %c0_6] : memref<16x64xf32, #tpu.memory_space<vmem>>, vector<16x64xf32>
    %cst_7 = arith.constant dense<0.000000e+00> : vector<104x64xf32>
    %16 = tpu.matmul %6, %15, %cst_7 {dimension_numbers = #tpu.dot_dimension_numbers<[1], [0], [0], [1], [0, 0, 1, 1], [], []>} : vector<104x16xf32>, vector<16x64xf32>, vector<104x64xf32> -> vector<104x64xf32>
    %17 = arith.addf %14, %16 : vector<104x64xf32>
    %c0_8 = arith.constant 0 : index
    %c0_9 = arith.constant 0 : index
    %18 = vector.load %arg5[%c0_8, %c0_9] : memref<16x64xf32, #tpu.memory_space<vmem>>, vector<16x64xf32>
    %cst_10 = arith.constant dense<0.000000e+00> : vector<104x64xf32>
    %19 = tpu.matmul %11, %18, %cst_10 {dimension_numbers = #tpu.dot_dimension_numbers<[1], [0], [0], [1], [0, 0, 1, 1], [], []>} : vector<104x16xf32>, vector<16x64xf32>, vector<104x64xf32> -> vector<104x64xf32>
    %20 = arith.addf %17, %19 : vector<104x64xf32>
    %c0_11 = arith.constant 0 : index
    %c0_12 = arith.constant 0 : index
    %21 = vector.load %arg6[%c0_11, %c0_12] : memref<1x64xf32, #tpu.memory_space<vmem>>, vector<1x64xf32>
    %22 = vector.broadcast %21 : vector<1x64xf32> to vector<104x64xf32>
    %23 = arith.addf %20, %22 : vector<104x64xf32>
    %cst_13 = arith.constant 0.000000e+00 : f32
    %24 = vector.broadcast %cst_13 : f32 to vector<104x64xf32>
    %25 = arith.maximumf %23, %24 : vector<104x64xf32>
    %c0_14 = arith.constant 0 : index
    %c0_15 = arith.constant 0 : index
    %26 = vector.load %arg7[%c0_14, %c0_15] : memref<64x64xf32, #tpu.memory_space<vmem>>, vector<64x64xf32>
    %cst_16 = arith.constant dense<0.000000e+00> : vector<104x64xf32>
    %27 = tpu.matmul %25, %26, %cst_16 {dimension_numbers = #tpu.dot_dimension_numbers<[1], [0], [0], [1], [0, 0, 1, 1], [], []>} : vector<104x64xf32>, vector<64x64xf32>, vector<104x64xf32> -> vector<104x64xf32>
    %c0_17 = arith.constant 0 : index
    %c0_18 = arith.constant 0 : index
    %28 = vector.load %arg8[%c0_17, %c0_18] : memref<1x64xf32, #tpu.memory_space<vmem>>, vector<1x64xf32>
    %29 = vector.broadcast %28 : vector<1x64xf32> to vector<104x64xf32>
    %30 = arith.addf %27, %29 : vector<104x64xf32>
    %cst_19 = arith.constant 0.000000e+00 : f32
    %31 = vector.broadcast %cst_19 : f32 to vector<104x64xf32>
    %32 = arith.maximumf %30, %31 : vector<104x64xf32>
    %c0_20 = arith.constant 0 : index
    %c0_21 = arith.constant 0 : index
    %33 = vector.load %arg9[%c0_20, %c0_21] : memref<64x128xf32, #tpu.memory_space<vmem>>, vector<64x128xf32>
    %cst_22 = arith.constant dense<0.000000e+00> : vector<104x128xf32>
    %34 = tpu.matmul %32, %33, %cst_22 {dimension_numbers = #tpu.dot_dimension_numbers<[1], [0], [0], [1], [0, 0, 1, 1], [], []>} : vector<104x64xf32>, vector<64x128xf32>, vector<104x128xf32> -> vector<104x128xf32>
    %35 = vector.extract_strided_slice %33 {offsets = [0, 0], sizes = [32, 128], strides = [1, 1]} : vector<64x128xf32> to vector<32x128xf32>
    %cst_23 = arith.constant dense<0.000000e+00> : vector<104x128xf32>
    %36 = tpu.matmul %12, %35, %cst_23 {dimension_numbers = #tpu.dot_dimension_numbers<[1], [0], [0], [1], [0, 0, 1, 1], [], []>} : vector<104x32xf32>, vector<32x128xf32>, vector<104x128xf32> -> vector<104x128xf32>
    %37 = arith.addf %34, %36 : vector<104x128xf32>
    %c0_24 = arith.constant 0 : index
    %c0_25 = arith.constant 0 : index
    %38 = vector.load %arg10[%c0_24, %c0_25] : memref<16x128xf32, #tpu.memory_space<vmem>>, vector<16x128xf32>
    %cst_26 = arith.constant dense<0.000000e+00> : vector<104x128xf32>
    %39 = tpu.matmul %6, %38, %cst_26 {dimension_numbers = #tpu.dot_dimension_numbers<[1], [0], [0], [1], [0, 0, 1, 1], [], []>} : vector<104x16xf32>, vector<16x128xf32>, vector<104x128xf32> -> vector<104x128xf32>
    %40 = arith.addf %37, %39 : vector<104x128xf32>
    %c0_27 = arith.constant 0 : index
    %c0_28 = arith.constant 0 : index
    %41 = vector.load %arg11[%c0_27, %c0_28] : memref<16x128xf32, #tpu.memory_space<vmem>>, vector<16x128xf32>
    %cst_29 = arith.constant dense<0.000000e+00> : vector<104x128xf32>
    %42 = tpu.matmul %11, %41, %cst_29 {dimension_numbers = #tpu.dot_dimension_numbers<[1], [0], [0], [1], [0, 0, 1, 1], [], []>} : vector<104x16xf32>, vector<16x128xf32>, vector<104x128xf32> -> vector<104x128xf32>
    %43 = arith.addf %40, %42 : vector<104x128xf32>
    %c0_30 = arith.constant 0 : index
    %c0_31 = arith.constant 0 : index
    %44 = vector.load %arg12[%c0_30, %c0_31] : memref<1x128xf32, #tpu.memory_space<vmem>>, vector<1x128xf32>
    %45 = vector.broadcast %44 : vector<1x128xf32> to vector<104x128xf32>
    %46 = arith.addf %43, %45 : vector<104x128xf32>
    %cst_32 = arith.constant dense<0.000000e+00> : vector<104xf32>
    %47 = vector.multi_reduction <add>, %46, %cst_32 [1] : vector<104x128xf32> to vector<104xf32>
    %48 = vector.shape_cast %47 : vector<104xf32> to vector<104x1xf32>
    %cst_33 = arith.constant 3.125000e-02 : f32
    %49 = vector.broadcast %cst_33 : f32 to vector<104x1xf32>
    %50 = arith.mulf %48, %49 : vector<104x1xf32>
    %51 = arith.mulf %46, %46 : vector<104x128xf32>
    %cst_34 = arith.constant dense<0.000000e+00> : vector<104xf32>
    %52 = vector.multi_reduction <add>, %51, %cst_34 [1] : vector<104x128xf32> to vector<104xf32>
    %53 = vector.shape_cast %52 : vector<104xf32> to vector<104x1xf32>
    %cst_35 = arith.constant 3.125000e-02 : f32
    %54 = vector.broadcast %cst_35 : f32 to vector<104x1xf32>
    %55 = arith.mulf %53, %54 : vector<104x1xf32>
    %56 = arith.mulf %50, %50 : vector<104x1xf32>
    %57 = arith.subf %55, %56 : vector<104x1xf32>
    %cst_36 = arith.constant 0.000000e+00 : f32
    %58 = vector.broadcast %cst_36 : f32 to vector<104x1xf32>
    %59 = arith.maximumf %57, %58 : vector<104x1xf32>
    %60 = vector.broadcast %50 : vector<104x1xf32> to vector<104x128xf32>
    %61 = arith.subf %46, %60 : vector<104x128xf32>
    %cst_37 = arith.constant 9.99999974E-6 : f32
    %62 = vector.broadcast %cst_37 : f32 to vector<104x1xf32>
    %63 = arith.addf %59, %62 : vector<104x1xf32>
    %64 = math.rsqrt %63 : vector<104x1xf32>
    %65 = vector.broadcast %64 : vector<104x1xf32> to vector<104x128xf32>
    %66 = arith.mulf %61, %65 : vector<104x128xf32>
    %c0_38 = arith.constant 0 : index
    %c0_39 = arith.constant 0 : index
    %67 = vector.load %arg13[%c0_38, %c0_39] : memref<1x128xf32, #tpu.memory_space<vmem>>, vector<1x128xf32>
    %68 = vector.broadcast %67 : vector<1x128xf32> to vector<104x128xf32>
    %69 = arith.mulf %66, %68 : vector<104x128xf32>
    %c0_40 = arith.constant 0 : index
    %c0_41 = arith.constant 0 : index
    %70 = vector.load %arg14[%c0_40, %c0_41] : memref<1x128xf32, #tpu.memory_space<vmem>>, vector<1x128xf32>
    %71 = vector.broadcast %70 : vector<1x128xf32> to vector<104x128xf32>
    %72 = arith.addf %69, %71 : vector<104x128xf32>
    %c0_42 = arith.constant 0 : index
    %c0_43 = arith.constant 0 : index
    %73 = vector.load %arg15[%c0_42, %c0_43] : memref<104x128xf32, #tpu.memory_space<vmem>>, vector<104x128xf32>
    tpu.vector_store %arg15[%c0_42, %c0_43], %72 {strides = array<i32>} : memref<104x128xf32, #tpu.memory_space<vmem>>, vector<104x128xf32>,
    return
  }
  func.func @transform_0(%arg0: i32) -> (i32, i32) {
    %c0_i32 = arith.constant 0 : i32
    %c0_i32_0 = arith.constant 0 : i32
    return %arg0, %c0_i32 : i32, i32
  }
  func.func @transform_1(%arg0: i32) -> (i32, i32) {
    %c0_i32 = arith.constant 0 : i32
    %c0_i32_0 = arith.constant 0 : i32
    return %arg0, %c0_i32 : i32, i32
  }
  func.func @transform_2(%arg0: i32) -> (i32, i32) {
    %c0_i32 = arith.constant 0 : i32
    %c0_i32_0 = arith.constant 0 : i32
    %c0_i32_1 = arith.constant 0 : i32
    return %c0_i32, %c0_i32_0 : i32, i32
  }
  func.func @transform_3(%arg0: i32) -> (i32, i32) {
    %c0_i32 = arith.constant 0 : i32
    %c0_i32_0 = arith.constant 0 : i32
    %c0_i32_1 = arith.constant 0 : i32
    return %c0_i32, %c0_i32_0 : i32, i32
  }
  func.func @transform_4(%arg0: i32) -> (i32, i32) {
    %c0_i32 = arith.constant 0 : i32
    %c0_i32_0 = arith.constant 0 : i32
    %c0_i32_1 = arith.constant 0 : i32
    return %c0_i32, %c0_i32_0 : i32, i32
  }
  func.func @transform_5(%arg0: i32) -> (i32, i32) {
    %c0_i32 = arith.constant 0 : i32
    %c0_i32_0 = arith.constant 0 : i32
    %c0_i32_1 = arith.constant 0 : i32
    return %c0_i32, %c0_i32_0 : i32, i32
  }
  func.func @transform_6(%arg0: i32) -> (i32, i32) {
    %c0_i32 = arith.constant 0 : i32
    %c0_i32_0 = arith.constant 0 : i32
    %c0_i32_1 = arith.constant 0 : i32
    return %c0_i32, %c0_i32_0 : i32, i32
  }
  func.func @transform_7(%arg0: i32) -> (i32, i32) {
    %c0_i32 = arith.constant 0 : i32
    %c0_i32_0 = arith.constant 0 : i32
    %c0_i32_1 = arith.constant 0 : i32
    return %c0_i32, %c0_i32_0 : i32, i32
  }
  func.func @transform_8(%arg0: i32) -> (i32, i32) {
    %c0_i32 = arith.constant 0 : i32
    %c0_i32_0 = arith.constant 0 : i32
    %c0_i32_1 = arith.constant 0 : i32
    return %c0_i32, %c0_i32_0 : i32, i32
  }
  func.func @transform_9(%arg0: i32) -> (i32, i32) {
    %c0_i32 = arith.constant 0 : i32
    %c0_i32_0 = arith.constant 0 : i32
    %c0_i32_1 = arith.constant 0 : i32
    return %c0_i32, %c0_i32_0 : i32, i32
  }
  func.func @transform_10(%arg0: i32) -> (i32, i32) {
    %c0_i32 = arith.constant 0 : i32
    %c0_i32_0 = arith.constant 0 : i32
    %c0_i32_1 = arith.constant 0 : i32
    return %c0_i32, %c0_i32_0 : i32, i32
  }
  func.func @transform_11(%arg0: i32) -> (i32, i32) {
    %c0_i32 = arith.constant 0 : i32
    %c0_i32_0 = arith.constant 0 : i32
    %c0_i32_1 = arith.constant 0 : i32
    return %c0_i32, %c0_i32_0 : i32, i32
  }
  func.func @transform_12(%arg0: i32) -> (i32, i32) {
    %c0_i32 = arith.constant 0 : i32
    %c0_i32_0 = arith.constant 0 : i32
    %c0_i32_1 = arith.constant 0 : i32
    return %c0_i32, %c0_i32_0 : i32, i32
  }
  func.func @transform_13(%arg0: i32) -> (i32, i32) {
    %c0_i32 = arith.constant 0 : i32
    %c0_i32_0 = arith.constant 0 : i32
    %c0_i32_1 = arith.constant 0 : i32
    return %c0_i32, %c0_i32_0 : i32, i32
  }
  func.func @transform_14(%arg0: i32) -> (i32, i32) {
    %c0_i32 = arith.constant 0 : i32
    %c0_i32_0 = arith.constant 0 : i32
    return %arg0, %c0_i32 : i32, i32
  }
}

</mosaic_0001>

<llo_original>
// kernel: edge_transition_forward.1
$region0: #{edge_transition_forward.1}
  #allocation0 [shape = 'u32[]', space=smem, size = 0x4, offset = 0x4, fixed_abs, tag = 'smem constant byte address 0x4 - core index']
  #allocation1 [shape = 'u32[144,128]{1,0:T(1,128)}', space=vmem, size = 0x12000, scoped, tag = 'internal scratch']
  %s0 = inlined_call_operand.vmem [shape: s32[208,2], index: 0, kind: input, shape index: {}]
  %s1 = inlined_call_operand.vmem [shape: f32[208,32], index: 1, kind: input, shape index: {}]
  %s2 = inlined_call_operand.vmem [shape: f32[32,64], index: 2, kind: input, shape index: {}]
  %s3 = inlined_call_operand.vmem [shape: f32[16,64], index: 3, kind: input, shape index: {}]
  %s4 = inlined_call_operand.vmem [shape: f32[16,64], index: 4, kind: input, shape index: {}]
  %s5 = inlined_call_operand.vmem [shape: f32[1,64], index: 5, kind: input, shape index: {}]
  %s6 = inlined_call_operand.vmem [shape: f32[64,64], index: 6, kind: input, shape index: {}]
  %s7 = inlined_call_operand.vmem [shape: f32[1,64], index: 7, kind: input, shape index: {}]
  %s8 = inlined_call_operand.vmem [shape: f32[64,128], index: 8, kind: input, shape index: {}]
  %s9 = inlined_call_operand.vmem [shape: f32[16,128], index: 9, kind: input, shape index: {}]
  %s10 = inlined_call_operand.vmem [shape: f32[16,128], index: 10, kind: input, shape index: {}]
  %s11 = inlined_call_operand.vmem [shape: f32[1,128], index: 11, kind: input, shape index: {}]
  %s12 = inlined_call_operand.vmem [shape: f32[1,128], index: 12, kind: input, shape index: {}]
  %s13 = inlined_call_operand.vmem [shape: f32[1,128], index: 13, kind: input, shape index: {}]
  %s14 = inlined_call_operand.vmem [shape: f32[208,128], index: 14, kind: output, shape index: {}]
  %s15 = sld [smem:[#allocation0]]
  $region89: #{edge_transition_forward.1} parent=0
    _
  %s17 = ssub.s32 1, %s15
  %s18 = scalar_select 0, %s17, %s15
  loop: start=0, step=1, limit=4
  $region2: #{edge_transition_forward.1} parent=0 // loop_pre_header
    _
  $region3: #{edge_transition_forward.1} parent=0 // loop_header
    %s20 = sphi 0, %s24
    %p21 = scmp.ge.s32.totalorder %s20, 4
    %s30 = sphi 0, %s32
    %s33 = sphi 0, %s30
    %s34 = sphi 0, %s33
    %s50 = sphi 0, %s34
    %s56 = sphi 0, %s58
    %s59 = sphi 0, %s56
    %s60 = sphi 0, %s59
    %s76 = sphi 0, %s60
    %s80 = sphi 0, %s80
    %s82 = sphi 0, %s80
    %s83 = sphi 0, %s82
    %s97 = sphi 0, %s83
    %s101 = sphi 0, %s101
    %s103 = sphi 0, %s101
    %s104 = sphi 0, %s103
    %s118 = sphi 0, %s104
    %s122 = sphi 0, %s122
    %s124 = sphi 0, %s122
    %s125 = sphi 0, %s124
    %s139 = sphi 0, %s125
    %s143 = sphi 0, %s143
    %s145 = sphi 0, %s143
    %s146 = sphi 0, %s145
    %s160 = sphi 0, %s146
    %s164 = sphi 0, %s164
    %s166 = sphi 0, %s164
    %s167 = sphi 0, %s166
    %s181 = sphi 0, %s167
    %s185 = sphi 0, %s185
    %s187 = sphi 0, %s185
    %s188 = sphi 0, %s187
    %s202 = sphi 0, %s188
    %s206 = sphi 0, %s206
    %s208 = sphi 0, %s206
    %s209 = sphi 0, %s208
    %s223 = sphi 0, %s209
    %s227 = sphi 0, %s227
    %s229 = sphi 0, %s227
    %s230 = sphi 0, %s229
    %s244 = sphi 0, %s230
    %s248 = sphi 0, %s248
    %s250 = sphi 0, %s248
    %s251 = sphi 0, %s250
    %s265 = sphi 0, %s251
    %s269 = sphi 0, %s269
    %s271 = sphi 0, %s269
    %s272 = sphi 0, %s271
    %s286 = sphi 0, %s272
    %s290 = sphi 0, %s290
    %s292 = sphi 0, %s290
    %s293 = sphi 0, %s292
    %s307 = sphi 0, %s293
    %s311 = sphi 0, %s311
    %s313 = sphi 0, %s311
    %s314 = sphi 0, %s313
    %s328 = sphi 0, %s314
    %s334 = sphi 0, %s336
    %s337 = sphi 0, %s334
    %s338 = sphi 0, %s337
    %s354 = sphi 0, %s338
  $region4: #{edge_transition_forward.1} parent=0 // loop_header_branch
    %23 = sbr.rel (%p21) target = $region8
  $region5: #{edge_transition_forward.1} parent=0 // loop_body
    %s25 = ssub.s32 %s20, 1
    %s26 = ssub.s32 %s20, 2
    %s27 = sadd.s32 %s20, 1
    %s28 = ssub.s32 %s20, %s27
    %p29 = scmp.eq.s32.totalorder %s28, 0
    %s31 = sadd.s32 %s30, 1
    %s32 = scalar_select %p29, %s30, %s31
    %p35 = pneg %p29
    %p36 = scmp.eq.s32.totalorder %s20, 1
    %p37 = por %p35, %p36
    %p38 = scmp.ne.s32.totalorder %s30, %s33
    %p39 = scmp.eq.s32.totalorder %s20, 0
    %p40 = por %p38, %p39
    %p41 = scmp.ne.s32.totalorder %s30, %s33
    %p42 = scmp.eq.s32.totalorder %s25, 1
    %p43 = por %p41, %p42
    %p44 = scmp.ne.s32.totalorder %s33, %s34
    %p45 = scmp.eq.s32.totalorder %s25, 0
    %p46 = por %p44, %p45
    %p47 = scmp.ne.s32.totalorder %s33, %s34
    %p48 = scmp.eq.s32.totalorder %s26, 1
    %p49 = por %p47, %p48
    %p51 = scmp.ne.s32.totalorder %s34, %s50
    %p52 = scmp.eq.s32.totalorder %s26, 0
    %p53 = por %p51, %p52
    %s54 = ssub.s32 %s20, %s27
    %p55 = scmp.eq.s32.totalorder %s54, 0
    %s57 = sadd.s32 %s56, 1
    %s58 = scalar_select %p55, %s56, %s57
    %p61 = pneg %p55
    %p62 = scmp.eq.s32.totalorder %s20, 1
    %p63 = por %p61, %p62
    %p64 = scmp.ne.s32.totalorder %s56, %s59
    %p65 = scmp.eq.s32.totalorder %s20, 0
    %p66 = por %p64, %p65
    %p67 = scmp.ne.s32.totalorder %s56, %s59
    %p68 = scmp.eq.s32.totalorder %s25, 1
    %p69 = por %p67, %p68
    %p70 = scmp.ne.s32.totalorder %s59, %s60
    %p71 = scmp.eq.s32.totalorder %s25, 0
    %p72 = por %p70, %p71
    %p73 = scmp.ne.s32.totalorder %s59, %s60
    %p74 = scmp.eq.s32.totalorder %s26, 1
    %p75 = por %p73, %p74
    %p77 = scmp.ne.s32.totalorder %s60, %s76
    %p78 = scmp.eq.s32.totalorder %s26, 0
    %p79 = por %p77, %p78
    %s81 = sadd.s32 %s80, 1
    %p84 = scmp.eq.s32.totalorder %s20, 1
    %p85 = scmp.ne.s32.totalorder %s80, %s82
    %p86 = scmp.eq.s32.totalorder %s20, 0
    %p87 = por %p85, %p86
    %p88 = scmp.ne.s32.totalorder %s80, %s82
    %p89 = scmp.eq.s32.totalorder %s25, 1
    %p90 = por %p88, %p89
    %p91 = scmp.ne.s32.totalorder %s82, %s83
    %p92 = scmp.eq.s32.totalorder %s25, 0
    %p93 = por %p91, %p92
    %p94 = scmp.ne.s32.totalorder %s82, %s83
    %p95 = scmp.eq.s32.totalorder %s26, 1
    %p96 = por %p94, %p95
    %p98 = scmp.ne.s32.totalorder %s83, %s97
    %p99 = scmp.eq.s32.totalorder %s26, 0
    %p100 = por %p98, %p99
    %s102 = sadd.s32 %s101, 1
    %p105 = scmp.eq.s32.totalorder %s20, 1
    %p106 = scmp.ne.s32.totalorder %s101, %s103
    %p107 = scmp.eq.s32.totalorder %s20, 0
    %p108 = por %p106, %p107
    %p109 = scmp.ne.s32.totalorder %s101, %s103
    %p110 = scmp.eq.s32.totalorder %s25, 1
    %p111 = por %p109, %p110
    %p112 = scmp.ne.s32.totalorder %s103, %s104
    %p113 = scmp.eq.s32.totalorder %s25, 0
    %p114 = por %p112, %p113
    %p115 = scmp.ne.s32.totalorder %s103, %s104
    %p116 = scmp.eq.s32.totalorder %s26, 1
    %p117 = por %p115, %p116
    %p119 = scmp.ne.s32.totalorder %s104, %s118
    %p120 = scmp.eq.s32.totalorder %s26, 0
    %p121 = por %p119, %p120
    %s123 = sadd.s32 %s122, 1
    %p126 = scmp.eq.s32.totalorder %s20, 1
    %p127 = scmp.ne.s32.totalorder %s122, %s124
    %p128 = scmp.eq.s32.totalorder %s20, 0
    %p129 = por %p127, %p128
    %p130 = scmp.ne.s32.totalorder %s122, %s124
    %p131 = scmp.eq.s32.totalorder %s25, 1
    %p132 = por %p130, %p131
    %p133 = scmp.ne.s32.totalorder %s124, %s125
    %p134 = scmp.eq.s32.totalorder %s25, 0
    %p135 = por %p133, %p134
    %p136 = scmp.ne.s32.totalorder %s124, %s125
    %p137 = scmp.eq.s32.totalorder %s26, 1
    %p138 = por %p136, %p137
    %p140 = scmp.ne.s32.totalorder %s125, %s139
    %p141 = scmp.eq.s32.totalorder %s26, 0
    %p142 = por %p140, %p141
    %s144 = sadd.s32 %s143, 1
    %p147 = scmp.eq.s32.totalorder %s20, 1
    %p148 = scmp.ne.s32.totalorder %s143, %s145
    %p149 = scmp.eq.s32.totalorder %s20, 0
    %p150 = por %p148, %p149
    %p151 = scmp.ne.s32.totalorder %s143, %s145
    %p152 = scmp.eq.s32.totalorder %s25, 1
    %p153 = por %p151, %p152
    %p154 = scmp.ne.s32.totalorder %s145, %s146
    %p155 = scmp.eq.s32.totalorder %s25, 0
    %p156 = por %p154, %p155
    %p157 = scmp.ne.s32.totalorder %s145, %s146
    %p158 = scmp.eq.s32.totalorder %s26, 1
    %p159 = por %p157, %p158
    %p161 = scmp.ne.s32.totalorder %s146, %s160
    %p162 = scmp.eq.s32.totalorder %s26, 0
    %p163 = por %p161, %p162
    %s165 = sadd.s32 %s164, 1
    %p168 = scmp.eq.s32.totalorder %s20, 1
    %p169 = scmp.ne.s32.totalorder %s164, %s166
    %p170 = scmp.eq.s32.totalorder %s20, 0
    %p171 = por %p169, %p170
    %p172 = scmp.ne.s32.totalorder %s164, %s166
    %p173 = scmp.eq.s32.totalorder %s25, 1
    %p174 = por %p172, %p173
    %p175 = scmp.ne.s32.totalorder %s166, %s167
    %p176 = scmp.eq.s32.totalorder %s25, 0
    %p177 = por %p175, %p176
    %p178 = scmp.ne.s32.totalorder %s166, %s167
    %p179 = scmp.eq.s32.totalorder %s26, 1
    %p180 = por %p178, %p179
    %p182 = scmp.ne.s32.totalorder %s167, %s181
    %p183 = scmp.eq.s32.totalorder %s26, 0
    %p184 = por %p182, %p183
    %s186 = sadd.s32 %s185, 1
    %p189 = scmp.eq.s32.totalorder %s20, 1
    %p190 = scmp.ne.s32.totalorder %s185, %s187
    %p191 = scmp.eq.s32.totalorder %s20, 0
    %p192 = por %p190, %p191
    %p193 = scmp.ne.s32.totalorder %s185, %s187
    %p194 = scmp.eq.s32.totalorder %s25, 1
    %p195 = por %p193, %p194
    %p196 = scmp.ne.s32.totalorder %s187, %s188
    %p197 = scmp.eq.s32.totalorder %s25, 0
    %p198 = por %p196, %p197
    %p199 = scmp.ne.s32.totalorder %s187, %s188
    %p200 = scmp.eq.s32.totalorder %s26, 1
    %p201 = por %p199, %p200
    %p203 = scmp.ne.s32.totalorder %s188, %s202
    %p204 = scmp.eq.s32.totalorder %s26, 0
    %p205 = por %p203, %p204
    %s207 = sadd.s32 %s206, 1
    %p210 = scmp.eq.s32.totalorder %s20, 1
    %p211 = scmp.ne.s32.totalorder %s206, %s208
    %p212 = scmp.eq.s32.totalorder %s20, 0
    %p213 = por %p211, %p212
    %p214 = scmp.ne.s32.totalorder %s206, %s208
    %p215 = scmp.eq.s32.totalorder %s25, 1
    %p216 = por %p214, %p215
    %p217 = scmp.ne.s32.totalorder %s208, %s209
    %p218 = scmp.eq.s32.totalorder %s25, 0
    %p219 = por %p217, %p218
    %p220 = scmp.ne.s32.totalorder %s208, %s209
    %p221 = scmp.eq.s32.totalorder %s26, 1
    %p222 = por %p220, %p221
    %p224 = scmp.ne.s32.totalorder %s209, %s223
    %p225 = scmp.eq.s32.totalorder %s26, 0
    %p226 = por %p224, %p225
    %s228 = sadd.s32 %s227, 1
    %p231 = scmp.eq.s32.totalorder %s20, 1
    %p232 = scmp.ne.s32.totalorder %s227, %s229
    %p233 = scmp.eq.s32.totalorder %s20, 0
    %p234 = por %p232, %p233
    %p235 = scmp.ne.s32.totalorder %s227, %s229
    %p236 = scmp.eq.s32.totalorder %s25, 1
    %p237 = por %p235, %p236
    %p238 = scmp.ne.s32.totalorder %s229, %s230
    %p239 = scmp.eq.s32.totalorder %s25, 0
    %p240 = por %p238, %p239
    %p241 = scmp.ne.s32.totalorder %s229, %s230
    %p242 = scmp.eq.s32.totalorder %s26, 1
    %p243 = por %p241, %p242
    %p245 = scmp.ne.s32.totalorder %s230, %s244
    %p246 = scmp.eq.s32.totalorder %s26, 0
    %p247 = por %p245, %p246
    %s249 = sadd.s32 %s248, 1
    %p252 = scmp.eq.s32.totalorder %s20, 1
    %p253 = scmp.ne.s32.totalorder %s248, %s250
    %p254 = scmp.eq.s32.totalorder %s20, 0
    %p255 = por %p253, %p254
    %p256 = scmp.ne.s32.totalorder %s248, %s250
    %p257 = scmp.eq.s32.totalorder %s25, 1
    %p258 = por %p256, %p257
    %p259 = scmp.ne.s32.totalorder %s250, %s251
    %p260 = scmp.eq.s32.totalorder %s25, 0
    %p261 = por %p259, %p260
    %p262 = scmp.ne.s32.totalorder %s250, %s251
    %p263 = scmp.eq.s32.totalorder %s26, 1
    %p264 = por %p262, %p263
    %p266 = scmp.ne.s32.totalorder %s251, %s265
    %p267 = scmp.eq.s32.totalorder %s26, 0
    %p268 = por %p266, %p267
    %s270 = sadd.s32 %s269, 1
    %p273 = scmp.eq.s32.totalorder %s20, 1
    %p274 = scmp.ne.s32.totalorder %s269, %s271
    %p275 = scmp.eq.s32.totalorder %s20, 0
    %p276 = por %p274, %p275
    %p277 = scmp.ne.s32.totalorder %s269, %s271
    %p278 = scmp.eq.s32.totalorder %s25, 1
    %p279 = por %p277, %p278
    %p280 = scmp.ne.s32.totalorder %s271, %s272
    %p281 = scmp.eq.s32.totalorder %s25, 0
    %p282 = por %p280, %p281
    %p283 = scmp.ne.s32.totalorder %s271, %s272
    %p284 = scmp.eq.s32.totalorder %s26, 1
    %p285 = por %p283, %p284
    %p287 = scmp.ne.s32.totalorder %s272, %s286
    %p288 = scmp.eq.s32.totalorder %s26, 0
    %p289 = por %p287, %p288
    %s291 = sadd.s32 %s290, 1
    %p294 = scmp.eq.s32.totalorder %s20, 1
    %p295 = scmp.ne.s32.totalorder %s290, %s292
    %p296 = scmp.eq.s32.totalorder %s20, 0
    %p297 = por %p295, %p296
    %p298 = scmp.ne.s32.totalorder %s290, %s292
    %p299 = scmp.eq.s32.totalorder %s25, 1
    %p300 = por %p298, %p299
    %p301 = scmp.ne.s32.totalorder %s292, %s293
    %p302 = scmp.eq.s32.totalorder %s25, 0
    %p303 = por %p301, %p302
    %p304 = scmp.ne.s32.totalorder %s292, %s293
    %p305 = scmp.eq.s32.totalorder %s26, 1
    %p306 = por %p304, %p305
    %p308 = scmp.ne.s32.totalorder %s293, %s307
    %p309 = scmp.eq.s32.totalorder %s26, 0
    %p310 = por %p308, %p309
    %s312 = sadd.s32 %s311, 1
    %p315 = scmp.eq.s32.totalorder %s20, 1
    %p316 = scmp.ne.s32.totalorder %s311, %s313
    %p317 = scmp.eq.s32.totalorder %s20, 0
    %p318 = por %p316, %p317
    %p319 = scmp.ne.s32.totalorder %s311, %s313
    %p320 = scmp.eq.s32.totalorder %s25, 1
    %p321 = por %p319, %p320
    %p322 = scmp.ne.s32.totalorder %s313, %s314
    %p323 = scmp.eq.s32.totalorder %s25, 0
    %p324 = por %p322, %p323
    %p325 = scmp.ne.s32.totalorder %s313, %s314
    %p326 = scmp.eq.s32.totalorder %s26, 1
    %p327 = por %p325, %p326
    %p329 = scmp.ne.s32.totalorder %s314, %s328
    %p330 = scmp.eq.s32.totalorder %s26, 0
    %p331 = por %p329, %p330
    %s332 = ssub.s32 %s20, %s27
    %p333 = scmp.eq.s32.totalorder %s332, 0
    %s335 = sadd.s32 %s334, 1
    %s336 = scalar_select %p333, %s334, %s335
    %p339 = pneg %p333
    %p340 = scmp.eq.s32.totalorder %s20, 1
    %p341 = por %p339, %p340
    %p342 = scmp.ne.s32.totalorder %s334, %s337
    %p343 = scmp.eq.s32.totalorder %s20, 0
    %p344 = por %p342, %p343
    %p345 = scmp.ne.s32.totalorder %s334, %s337
    %p346 = scmp.eq.s32.totalorder %s25, 1
    %p347 = por %p345, %p346
    %p348 = scmp.ne.s32.totalorder %s337, %s338
    %p349 = scmp.eq.s32.totalorder %s25, 0
    %p350 = por %p348, %p349
    %p351 = scmp.ne.s32.totalorder %s337, %s338
    %p352 = scmp.eq.s32.totalorder %s26, 1
    %p353 = por %p351, %p352
    %p355 = scmp.ne.s32.totalorder %s338, %s354
    %p356 = scmp.eq.s32.totalorder %s26, 0
    %p357 = por %p355, %p356
    %p358 = scmp.le.s32.totalorder 1, %s20
    %p359 = scmp.lt.s32.totalorder %s20, 3
    %p360 = pnand %p358, %p359
    %p361 = pneg %p360
    // Predicated region
    $region9: #{edge_transition_forward.1} parent=5 // pred_check
      _
    $region10: #{edge_transition_forward.1} parent=5 // pred_check_branch
      %363 = sbr.rel (%p360) target = $region12
    $region11: #{edge_transition_forward.1} parent=5 // pred_region
      %s364 = ssub.s32 %s20, 1
      // Predicated region
      $region13: #{edge_transition_forward.1} parent=11 // pred_check
        %p365 = pneg %p93
      $region14: #{edge_transition_forward.1} parent=11 // pred_check_branch
        %367 = sbr.rel (%p365) target = $region16
      $region15: #{edge_transition_forward.1} parent=11 // pred_region
        _
      $region16: #{edge_transition_forward.1} parent=11 // pred_fallthru
        _
      // Predicated region
      $region17: #{edge_transition_forward.1} parent=11 // pred_check
        %p368 = pneg %p114
      $region18: #{edge_transition_forward.1} parent=11 // pred_check_branch
        %370 = sbr.rel (%p368) target = $region20
      $region19: #{edge_transition_forward.1} parent=11 // pred_region
        _
      $region20: #{edge_transition_forward.1} parent=11 // pred_fallthru
        _
      // Predicated region
      $region21: #{edge_transition_forward.1} parent=11 // pred_check
        %p371 = pneg %p135
      $region22: #{edge_transition_forward.1} parent=11 // pred_check_branch
        %373 = sbr.rel (%p371) target = $region24
      $region23: #{edge_transition_forward.1} parent=11 // pred_region
        _
      $region24: #{edge_transition_forward.1} parent=11 // pred_fallthru
        _
      // Predicated region
      $region25: #{edge_transition_forward.1} parent=11 // pred_check
        %p374 = pneg %p156
      $region26: #{edge_transition_forward.1} parent=11 // pred_check_branch
        %376 = sbr.rel (%p374) target = $region28
      $region27: #{edge_transition_forward.1} parent=11 // pred_region
        _
      $region28: #{edge_transition_forward.1} parent=11 // pred_fallthru
        _
      // Predicated region
      $region29: #{edge_transition_forward.1} parent=11 // pred_check
        %p377 = pneg %p177
      $region30: #{edge_transition_forward.1} parent=11 // pred_check_branch
        %379 = sbr.rel (%p377) target = $region32
      $region31: #{edge_transition_forward.1} parent=11 // pred_region
        _
      $region32: #{edge_transition_forward.1} parent=11 // pred_fallthru
        _
      // Predicated region
      $region33: #{edge_transition_forward.1} parent=11 // pred_check
        %p380 = pneg %p198
      $region34: #{edge_transition_forward.1} parent=11 // pred_check_branch
        %382 = sbr.rel (%p380) target = $region36
      $region35: #{edge_transition_forward.1} parent=11 // pred_region
        _
      $region36: #{edge_transition_forward.1} parent=11 // pred_fallthru
        _
      // Predicated region
      $region37: #{edge_transition_forward.1} parent=11 // pred_check
        %p383 = pneg %p219
      $region38: #{edge_transition_forward.1} parent=11 // pred_check_branch
        %385 = sbr.rel (%p383) target = $region40
      $region39: #{edge_transition_forward.1} parent=11 // pred_region
        _
      $region40: #{edge_transition_forward.1} parent=11 // pred_fallthru
        _
      // Predicated region
      $region41: #{edge_transition_forward.1} parent=11 // pred_check
        %p386 = pneg %p240
      $region42: #{edge_transition_forward.1} parent=11 // pred_check_branch
        %388 = sbr.rel (%p386) target = $region44
      $region43: #{edge_transition_forward.1} parent=11 // pred_region
        _
      $region44: #{edge_transition_forward.1} parent=11 // pred_fallthru
        _
      // Predicated region
      $region45: #{edge_transition_forward.1} parent=11 // pred_check
        %p389 = pneg %p261
      $region46: #{edge_transition_forward.1} parent=11 // pred_check_branch
        %391 = sbr.rel (%p389) target = $region48
      $region47: #{edge_transition_forward.1} parent=11 // pred_region
        _
      $region48: #{edge_transition_forward.1} parent=11 // pred_fallthru
        _
      // Predicated region
      $region49: #{edge_transition_forward.1} parent=11 // pred_check
        %p392 = pneg %p282
      $region50: #{edge_transition_forward.1} parent=11 // pred_check_branch
        %394 = sbr.rel (%p392) target = $region52
      $region51: #{edge_transition_forward.1} parent=11 // pred_region
        _
      $region52: #{edge_transition_forward.1} parent=11 // pred_fallthru
        _
      // Predicated region
      $region53: #{edge_transition_forward.1} parent=11 // pred_check
        %p395 = pneg %p303
      $region54: #{edge_transition_forward.1} parent=11 // pred_check_branch
        %397 = sbr.rel (%p395) target = $region56
      $region55: #{edge_transition_forward.1} parent=11 // pred_region
        _
      $region56: #{edge_transition_forward.1} parent=11 // pred_fallthru
        _
      // Predicated region
      $region57: #{edge_transition_forward.1} parent=11 // pred_check
        %p398 = pneg %p324
      $region58: #{edge_transition_forward.1} parent=11 // pred_check_branch
        %400 = sbr.rel (%p398) target = $region60
      $region59: #{edge_transition_forward.1} parent=11 // pred_region
        _
      $region60: #{edge_transition_forward.1} parent=11 // pred_fallthru
        _
    $region12: #{edge_transition_forward.1} parent=5 // pred_fallthru
      _
    %p401 = scmp.lt.s32.totalorder %s20, 2
    // Predicated region
    $region61: #{edge_transition_forward.1} parent=5 // pred_check
      %p402 = pneg %p401
    $region62: #{edge_transition_forward.1} parent=5 // pred_check_branch
      %404 = sbr.rel (%p402) target = $region64
    $region63: #{edge_transition_forward.1} parent=5 // pred_region
      // Predicated region
      $region65: #{edge_transition_forward.1} parent=63 // pred_check
        %p405 = pneg %p40
      $region66: #{edge_transition_forward.1} parent=63 // pred_check_branch
        %407 = sbr.rel (%p405) target = $region68
      $region67: #{edge_transition_forward.1} parent=63 // pred_region
        %s408 = smul.u32 13, %s20
        %p409 = scmp.lt.s32.totalorder %s408, 25
        %s410 = scalar_select %p409, %s408, 25
        %s411 = smul.addr %s410, 8
        %s412 = scalar_lea.vmem %s0, %s411
        %s413 = smul.u32 13, %s20
      $region68: #{edge_transition_forward.1} parent=63 // pred_fallthru
        _
      // Predicated region
      $region69: #{edge_transition_forward.1} parent=63 // pred_check
        %p414 = pneg %p66
      $region70: #{edge_transition_forward.1} parent=63 // pred_check_branch
        %416 = sbr.rel (%p414) target = $region72
      $region71: #{edge_transition_forward.1} parent=63 // pred_region
        %s417 = smul.u32 13, %s20
        %p418 = scmp.lt.s32.totalorder %s417, 25
        %s419 = scalar_select %p418, %s417, 25
        %s420 = smul.addr %s419, 8
        %s421 = scalar_lea.vmem %s1, %s420
        %s422 = smul.u32 13, %s20
      $region72: #{edge_transition_forward.1} parent=63 // pred_fallthru
        _
    $region64: #{edge_transition_forward.1} parent=5 // pred_fallthru
      _
    %p423 = scmp.le.s32.totalorder 1, %s20
    %p424 = scmp.lt.s32.totalorder %s20, 3
    %p425 = pnand %p423, %p424
    %p426 = pneg %p425
    // Predicated region
    $region73: #{edge_transition_forward.1} parent=5 // pred_check
      _
    $region74: #{edge_transition_forward.1} parent=5 // pred_check_branch
      %428 = sbr.rel (%p425) target = $region76
    $region75: #{edge_transition_forward.1} parent=5 // pred_region
      %s429 = ssub.s32 %s20, 1
      %s430 = smul.u32 13, %s25
      %p431 = scmp.lt.s32.totalorder %s430, 25
      %s432 = scalar_select %p431, %s430, 25
      %s433 = smul.addr %s432, 8
      %s434 = scalar_lea.vmem %s0, %s433
      %p435 = pneg %p46
      %p436 = pneg %p43
      %s437 = smul.u32 13, %s25
      %p438 = scmp.lt.s32.totalorder %s437, 25
      %s439 = scalar_select %p438, %s437, 25
      %s440 = smul.addr %s439, 8
      %s441 = scalar_lea.vmem %s1, %s440
      %p442 = pneg %p72
      %p443 = pneg %p69
      %p444 = pneg %p93
      %p445 = pneg %p90
      %p446 = pneg %p114
      %p447 = pneg %p111
      %p448 = pneg %p135
      %p449 = pneg %p132
      %p450 = pneg %p156
      %p451 = pneg %p153
      %p452 = pneg %p177
      %p453 = pneg %p174
      %p454 = pneg %p198
      %p455 = pneg %p195
      %p456 = pneg %p219
      %p457 = pneg %p216
      %p458 = pneg %p240
      %p459 = pneg %p237
      %p460 = pneg %p261
      %p461 = pneg %p258
      %p462 = pneg %p282
      %p463 = pneg %p279
      %p464 = pneg %p303
      %p465 = pneg %p300
      %p466 = pneg %p324
      %p467 = pneg %p321
      %p468 = pneg %p350
      %p469 = pneg %p347
      %s470 = smul.u32 13, %s25
      %p471 = scmp.lt.s32.totalorder %s470, 25
      %s472 = scalar_select %p471, %s470, 25
      %s473 = smul.addr %s472, 8
      %s474 = scalar_lea.vmem %s14, %s473
      %s475 = smul.u32 13, %s25
      %p476 = scmp.lt.s32.totalorder %s475, 25
      %s477 = scalar_select %p476, %s475, 25
      %s478 = smul.addr %s477, 8
      %s479 = scalar_lea.vmem %s0, %s478
      %s480 = smul.u32 13, %s25
      %s481 = smul.u32 13, %s25
      %p482 = scmp.lt.s32.totalorder %s481, 25
      %s483 = scalar_select %p482, %s481, 25
      %s484 = smul.addr %s483, 8
      %s485 = scalar_lea.vmem %s1, %s484
      %s486 = smul.u32 13, %s25
      %s487 = smul.u32 13, %s25
      %p488 = scmp.lt.s32.totalorder %s487, 25
      %s489 = scalar_select %p488, %s487, 25
      %s490 = smul.addr %s489, 8
      %s491 = scalar_lea.vmem %s14, %s490
      %s492 = smul.u32 13, %s25
      %v493 = vld [vmem:[%s479] sm:$0xff]
      %v494 = vld [vmem:[%s479 + $0x8] sm:$0xff]
      %v495 = vld [vmem:[%s479 + $0x10] sm:$0xff]
      %v496 = vld [vmem:[%s479 + $0x18] sm:$0xff]
      %v497 = vld [vmem:[%s479 + $0x20] sm:$0xff]
      %v498 = vld [vmem:[%s479 + $0x28] sm:$0xff]
      %v499 = vld [vmem:[%s479 + $0x30] sm:$0xff]
      %v500 = vld [vmem:[%s479 + $0x38] sm:$0xff]
      %v501 = vld [vmem:[%s479 + $0x40] sm:$0xff]
      %v502 = vld [vmem:[%s479 + $0x48] sm:$0xff]
      %v503 = vld [vmem:[%s479 + $0x50] sm:$0xff]
      %v504 = vld [vmem:[%s479 + $0x58] sm:$0xff]
      %v505 = vld [vmem:[%s479 + $0x60] sm:$0xff]
      %v506 = vlaneseq
      %v507 = vand.u32 %v506, 127
      %508 = vset.pattern.permute.xlu0 0
      %509 = vperm.xlu0 %508, %v493
      %v510 = vpop.permute.xlu0 %509
      %511 = vset.pattern.permute.xlu0 0
      %512 = vperm.xlu0 %511, %v494
      %v513 = vpop.permute.xlu0 %512
      %514 = vset.pattern.permute.xlu0 0
      %515 = vperm.xlu0 %514, %v495
      %v516 = vpop.permute.xlu0 %515
      %517 = vset.pattern.permute.xlu0 0
      %518 = vperm.xlu0 %517, %v496
      %v519 = vpop.permute.xlu0 %518
      %520 = vset.pattern.permute.xlu0 0
      %521 = vperm.xlu0 %520, %v497
      %v522 = vpop.permute.xlu0 %521
      %523 = vset.pattern.permute.xlu0 0
      %524 = vperm.xlu0 %523, %v498
      %v525 = vpop.permute.xlu0 %524
      %526 = vset.pattern.permute.xlu0 0
      %527 = vperm.xlu0 %526, %v499
      %v528 = vpop.permute.xlu0 %527
      %529 = vset.pattern.permute.xlu0 0
      %530 = vperm.xlu0 %529, %v500
      %v531 = vpop.permute.xlu0 %530
      %532 = vset.pattern.permute.xlu0 0
      %533 = vperm.xlu0 %532, %v501
      %v534 = vpop.permute.xlu0 %533
      %535 = vset.pattern.permute.xlu0 0
      %536 = vperm.xlu0 %535, %v502
      %v537 = vpop.permute.xlu0 %536
      %538 = vset.pattern.permute.xlu0 0
      %539 = vperm.xlu0 %538, %v503
      %v540 = vpop.permute.xlu0 %539
      %541 = vset.pattern.permute.xlu0 0
      %542 = vperm.xlu0 %541, %v504
      %v543 = vpop.permute.xlu0 %542
      %544 = vset.pattern.permute.xlu0 0
      %545 = vperm.xlu0 %544, %v505
      %v546 = vpop.permute.xlu0 %545
      %vm547 = vcmp.eq.s32.totalorder %v510, %v507
      %vm548 = vcmp.eq.s32.totalorder %v513, %v507
      %vm549 = vcmp.eq.s32.totalorder %v516, %v507
      %vm550 = vcmp.eq.s32.totalorder %v519, %v507
      %vm551 = vcmp.eq.s32.totalorder %v522, %v507
      %vm552 = vcmp.eq.s32.totalorder %v525, %v507
      %vm553 = vcmp.eq.s32.totalorder %v528, %v507
      %vm554 = vcmp.eq.s32.totalorder %v531, %v507
      %vm555 = vcmp.eq.s32.totalorder %v534, %v507
      %vm556 = vcmp.eq.s32.totalorder %v537, %v507
      %vm557 = vcmp.eq.s32.totalorder %v540, %v507
      %vm558 = vcmp.eq.s32.totalorder %v543, %v507
      %vm559 = vcmp.eq.s32.totalorder %v546, %v507
      %v560 = vsel %vm547, 1, 0
      %v561 = vsel %vm548, 1, 0
      %v562 = vsel %vm549, 1, 0
      %v563 = vsel %vm550, 1, 0
      %v564 = vsel %vm551, 1, 0
      %v565 = vsel %vm552, 1, 0
      %v566 = vsel %vm553, 1, 0
      %v567 = vsel %vm554, 1, 0
      %v568 = vsel %vm555, 1, 0
      %v569 = vsel %vm556, 1, 0
      %v570 = vsel %vm557, 1, 0
      %v571 = vsel %vm558, 1, 0
      %v572 = vsel %vm559, 1, 0
      %v573 = vcvt.s32.f32 %v560
      %v574 = vcvt.s32.f32 %v561
      %v575 = vcvt.s32.f32 %v562
      %v576 = vcvt.s32.f32 %v563
      %v577 = vcvt.s32.f32 %v564
      %v578 = vcvt.s32.f32 %v565
      %v579 = vcvt.s32.f32 %v566
      %v580 = vcvt.s32.f32 %v567
      %v581 = vcvt.s32.f32 %v568
      %v582 = vcvt.s32.f32 %v569
      %v583 = vcvt.s32.f32 %v570
      %v584 = vcvt.s32.f32 %v571
      %v585 = vcvt.s32.f32 %v572
      %586 = vset.pattern.permute.xlu0 1
      %587 = vperm.xlu0 %586, %v493
      %v588 = vpop.permute.xlu0 %587
      %589 = vset.pattern.permute.xlu0 1
      %590 = vperm.xlu0 %589, %v494
      %v591 = vpop.permute.xlu0 %590
      %592 = vset.pattern.permute.xlu0 1
      %593 = vperm.xlu0 %592, %v495
      %v594 = vpop.permute.xlu0 %593
      %595 = vset.pattern.permute.xlu0 1
      %596 = vperm.xlu0 %595, %v496
      %v597 = vpop.permute.xlu0 %596
      %598 = vset.pattern.permute.xlu0 1
      %599 = vperm.xlu0 %598, %v497
      %v600 = vpop.permute.xlu0 %599
      %601 = vset.pattern.permute.xlu0 1
      %602 = vperm.xlu0 %601, %v498
      %v603 = vpop.permute.xlu0 %602
      %604 = vset.pattern.permute.xlu0 1
      %605 = vperm.xlu0 %604, %v499
      %v606 = vpop.permute.xlu0 %605
      %607 = vset.pattern.permute.xlu0 1
      %608 = vperm.xlu0 %607, %v500
      %v609 = vpop.permute.xlu0 %608
      %610 = vset.pattern.permute.xlu0 1
      %611 = vperm.xlu0 %610, %v501
      %v612 = vpop.permute.xlu0 %611
      %613 = vset.pattern.permute.xlu0 1
      %614 = vperm.xlu0 %613, %v502
      %v615 = vpop.permute.xlu0 %614
      %616 = vset.pattern.permute.xlu0 1
      %617 = vperm.xlu0 %616, %v503
      %v618 = vpop.permute.xlu0 %617
      %619 = vset.pattern.permute.xlu0 1
      %620 = vperm.xlu0 %619, %v504
      %v621 = vpop.permute.xlu0 %620
      %622 = vset.pattern.permute.xlu0 1
      %623 = vperm.xlu0 %622, %v505
      %v624 = vpop.permute.xlu0 %623
      %vm625 = vcmp.eq.s32.totalorder %v588, %v507
      %vm626 = vcmp.eq.s32.totalorder %v591, %v507
      %vm627 = vcmp.eq.s32.totalorder %v594, %v507
      %vm628 = vcmp.eq.s32.totalorder %v597, %v507
      %vm629 = vcmp.eq.s32.totalorder %v600, %v507
      %vm630 = vcmp.eq.s32.totalorder %v603, %v507
      %vm631 = vcmp.eq.s32.totalorder %v606, %v507
      %vm632 = vcmp.eq.s32.totalorder %v609, %v507
      %vm633 = vcmp.eq.s32.totalorder %v612, %v507
      %vm634 = vcmp.eq.s32.totalorder %v615, %v507
      %vm635 = vcmp.eq.s32.totalorder %v618, %v507
      %vm636 = vcmp.eq.s32.totalorder %v621, %v507
      %vm637 = vcmp.eq.s32.totalorder %v624, %v507
      %v638 = vsel %vm625, 1, 0
      %v639 = vsel %vm626, 1, 0
      %v640 = vsel %vm627, 1, 0
      %v641 = vsel %vm628, 1, 0
      %v642 = vsel %vm629, 1, 0
      %v643 = vsel %vm630, 1, 0
      %v644 = vsel %vm631, 1, 0
      %v645 = vsel %vm632, 1, 0
      %v646 = vsel %vm633, 1, 0
      %v647 = vsel %vm634, 1, 0
      %v648 = vsel %vm635, 1, 0
      %v649 = vsel %vm636, 1, 0
      %v650 = vsel %vm637, 1, 0
      %v651 = vcvt.s32.f32 %v638
      %v652 = vcvt.s32.f32 %v639
      %v653 = vcvt.s32.f32 %v640
      %v654 = vcvt.s32.f32 %v641
      %v655 = vcvt.s32.f32 %v642
      %v656 = vcvt.s32.f32 %v643
      %v657 = vcvt.s32.f32 %v644
      %v658 = vcvt.s32.f32 %v645
      %v659 = vcvt.s32.f32 %v646
      %v660 = vcvt.s32.f32 %v647
      %v661 = vcvt.s32.f32 %v648
      %v662 = vcvt.s32.f32 %v649
      %v663 = vcvt.s32.f32 %v650
      %v664 = vld [vmem:[%s485] sm:$0xff]
      %v665 = vld [vmem:[%s485 + $0x8] sm:$0xff]
      %v666 = vld [vmem:[%s485 + $0x10] sm:$0xff]
      %v667 = vld [vmem:[%s485 + $0x18] sm:$0xff]
      %v668 = vld [vmem:[%s485 + $0x20] sm:$0xff]
      %v669 = vld [vmem:[%s485 + $0x28] sm:$0xff]
      %v670 = vld [vmem:[%s485 + $0x30] sm:$0xff]
      %v671 = vld [vmem:[%s485 + $0x38] sm:$0xff]
      %v672 = vld [vmem:[%s485 + $0x40] sm:$0xff]
      %v673 = vld [vmem:[%s485 + $0x48] sm:$0xff]
      %v674 = vld [vmem:[%s485 + $0x50] sm:$0xff]
      %v675 = vld [vmem:[%s485 + $0x58] sm:$0xff]
      %v676 = vld [vmem:[%s485 + $0x60] sm:$0xff]
      %v677 = vld [vmem:[%s2] sm:$0xff]
      %v678 = vld [vmem:[%s2 + $0x8] sm:$0xff]
      %v679 = vld [vmem:[%s2 + $0x10] sm:$0xff]
      %v680 = vld [vmem:[%s2 + $0x18] sm:$0xff]
      %v681 = vld [vmem:[%s3] sm:$0xff]
      %v682 = vld [vmem:[%s3 + $0x8] sm:$0xff]
      %vm683 = vcmask 130048
      %v685 = vsel %vm683, %v573, 0
      %v688 = vsel %vm683, %v574, 0
      %v691 = vsel %vm683, %v575, 0
      %v694 = vsel %vm683, %v576, 0
      %v697 = vsel %vm683, %v577, 0
      %v700 = vsel %vm683, %v578, 0
      %v703 = vsel %vm683, %v579, 0
      %v706 = vsel %vm683, %v580, 0
      %v709 = vsel %vm683, %v581, 0
      %v712 = vsel %vm683, %v582, 0
      %v715 = vsel %vm683, %v583, 0
      %v718 = vsel %vm683, %v584, 0
      %v721 = vsel %vm683, %v585, 0
      %723 = vmatprep.subr.mxu0 0.0
      %724 = vmatpush1.msra.mxu0 0.0
      %725 = vmatprep.subr.mxu0 0.0
      %726 = vmatpush1.msra.mxu0 0.0
      %727 = vmatprep.subr.mxu0 0.0
      %728 = vmatpush1.msra.mxu0 0.0
      %729 = vmatprep.subr.mxu0 0.0
      %730 = vmatpush1.msra.mxu0 0.0
      %731 = vmatprep.subr.mxu0 0.0
      %732 = vmatpush1.msra.mxu0 0.0
      %733 = vmatprep.subr.mxu0 0.0
      %734 = vmatpush1.msra.mxu0 0.0
      %735 = vmatprep.subr.mxu0 0.0
      %736 = vmatpush1.msra.mxu0 0.0
      %737 = vmatprep.subr.mxu0 0.0
      %738 = vmatpush1.msra.mxu0 0.0
      %739 = vmatprep.subr.mxu0 0.0
      %740 = vmatpush1.msra.mxu0 0.0
      %741 = vmatprep.subr.mxu0 0.0
      %742 = vmatpush1.msra.mxu0 0.0
      %743 = vmatprep.subr.mxu0 0.0
      %744 = vmatpush1.msra.mxu0 0.0
      %745 = vmatprep.subr.mxu0 0.0
      %746 = vmatpush1.msra.mxu0 0.0
      %747 = vmatprep.subr.mxu0 0.0
      %748 = vmatpush1.msra.mxu0 0.0
      %749 = vmatprep.subr.mxu0 0.0
      %750 = vmatpush1.msra.mxu0 0.0
      %751 = vmatprep.subr.mxu0 0.0
      %752 = vmatpush1.msra.mxu0 %v682
      %753 = vmatprep.subr.mxu0 0.0
      %754 = vmatpush1.msra.mxu0 %v681
      %755 = vmatprep.subr.mxu0 0.0
      %756 = vmatpush2.msra.mxu0 0.0
      %757 = vmatprep.subr.mxu0 0.0
      %758 = vmatpush2.msra.mxu0 0.0
      %759 = vmatprep.subr.mxu0 0.0
      %760 = vmatpush2.msra.mxu0 0.0
      %761 = vmatprep.subr.mxu0 0.0
      %762 = vmatpush2.msra.mxu0 0.0
      %763 = vmatprep.subr.mxu0 0.0
      %764 = vmatpush2.msra.mxu0 0.0
      %765 = vmatprep.subr.mxu0 0.0
      %766 = vmatpush2.msra.mxu0 0.0
      %767 = vmatprep.subr.mxu0 0.0
      %768 = vmatpush2.msra.mxu0 0.0
      %769 = vmatprep.subr.mxu0 0.0
      %770 = vmatpush2.msra.mxu0 0.0
      %771 = vmatprep.subr.mxu0 0.0
      %772 = vmatpush2.msra.mxu0 0.0
      %773 = vmatprep.subr.mxu0 0.0
      %774 = vmatpush2.msra.mxu0 0.0
      %775 = vmatprep.subr.mxu0 0.0
      %776 = vmatpush2.msra.mxu0 0.0
      %777 = vmatprep.subr.mxu0 0.0
      %778 = vmatpush2.msra.mxu0 0.0
      %779 = vmatprep.subr.mxu0 0.0
      %780 = vmatpush2.msra.mxu0 0.0
      %781 = vmatprep.subr.mxu0 0.0
      %782 = vmatpush2.msra.mxu0 0.0
      %783 = vmatprep.subr.mxu0 0.0
      %784 = vmatpush2.msra.mxu0 0.0
      %785 = vmatprep.subr.mxu0 0.0
      %786 = vmatpush2.msra.mxu0 0.0
      %787 = vmatprep.mubr.f32.mxu0 0.0
      %788 = vmatmul.mubr.f32.gmra.mxu0 %v685
      %v789 = vpop.f32.mrf.mxu0
      %v790 = vadd.f32 0.0, %v789
      %v791 = vpop.f32.mrf.mxu0
      %792 = vmatprep.mubr.f32.mxu0 0.0
      %793 = vmatmul.mubr.f32.gmra.mxu0 %v688
      %v794 = vpop.f32.mrf.mxu0
      %v795 = vadd.f32 0.0, %v794
      %v796 = vpop.f32.mrf.mxu0
      %797 = vmatprep.mubr.f32.mxu0 0.0
      %798 = vmatmul.mubr.f32.gmra.mxu0 %v691
      %v799 = vpop.f32.mrf.mxu0
      %v800 = vadd.f32 0.0, %v799
      %v801 = vpop.f32.mrf.mxu0
      %802 = vmatprep.mubr.f32.mxu0 0.0
      %803 = vmatmul.mubr.f32.gmra.mxu0 %v694
      %v804 = vpop.f32.mrf.mxu0
      %v805 = vadd.f32 0.0, %v804
      %v806 = vpop.f32.mrf.mxu0
      %807 = vmatprep.mubr.f32.mxu0 0.0
      %808 = vmatmul.mubr.f32.gmra.mxu0 %v697
      %v809 = vpop.f32.mrf.mxu0
      %v810 = vadd.f32 0.0, %v809
      %v811 = vpop.f32.mrf.mxu0
      %812 = vmatprep.mubr.f32.mxu0 0.0
      %813 = vmatmul.mubr.f32.gmra.mxu0 %v700
      %v814 = vpop.f32.mrf.mxu0
      %v815 = vadd.f32 0.0, %v814
      %v816 = vpop.f32.mrf.mxu0
      %817 = vmatprep.mubr.f32.mxu0 0.0
      %818 = vmatmul.mubr.f32.gmra.mxu0 %v703
      %v819 = vpop.f32.mrf.mxu0
      %v820 = vadd.f32 0.0, %v819
      %v821 = vpop.f32.mrf.mxu0
      %822 = vmatprep.mubr.f32.mxu0 0.0
      %823 = vmatmul.mubr.f32.gmra.mxu0 %v706
      %v824 = vpop.f32.mrf.mxu0
      %v825 = vadd.f32 0.0, %v824
      %v826 = vpop.f32.mrf.mxu0
      %827 = vmatprep.mubr.f32.mxu0 0.0
      %828 = vmatmul.mubr.f32.gmra.mxu0 %v709
      %v829 = vpop.f32.mrf.mxu0
      %v830 = vadd.f32 0.0, %v829
      %v831 = vpop.f32.mrf.mxu0
      %832 = vmatprep.mubr.f32.mxu0 0.0
      %833 = vmatmul.mubr.f32.gmra.mxu0 %v712
      %v834 = vpop.f32.mrf.mxu0
      %v835 = vadd.f32 0.0, %v834
      %v836 = vpop.f32.mrf.mxu0
      %837 = vmatprep.mubr.f32.mxu0 0.0
      %838 = vmatmul.mubr.f32.gmra.mxu0 %v715
      %v839 = vpop.f32.mrf.mxu0
      %v840 = vadd.f32 0.0, %v839
      %v841 = vpop.f32.mrf.mxu0
      %842 = vmatprep.mubr.f32.mxu0 0.0
      %843 = vmatmul.mubr.f32.gmra.mxu0 %v718
      %v844 = vpop.f32.mrf.mxu0
      %v845 = vadd.f32 0.0, %v844
      %v846 = vpop.f32.mrf.mxu0
      %847 = vmatprep.mubr.f32.mxu0 0.0
      %848 = vmatmul.mubr.f32.gmra.mxu0 %v721
      %v849 = vpop.f32.mrf.mxu0
      %v850 = vadd.f32 0.0, %v849
      %v851 = vpop.f32.mrf.mxu0
      %852 = vdwg.mxu0
      %vm853 = vcmask 261120
      %v855 = vsel %vm853, %v664, 0
      %v858 = vsel %vm853, %v665, 0
      %v861 = vsel %vm853, %v666, 0
      %v864 = vsel %vm853, %v667, 0
      %v867 = vsel %vm853, %v668, 0
      %v870 = vsel %vm853, %v669, 0
      %v873 = vsel %vm853, %v670, 0
      %v876 = vsel %vm853, %v671, 0
      %v879 = vsel %vm853, %v672, 0
      %v882 = vsel %vm853, %v673, 0
      %v885 = vsel %vm853, %v674, 0
      %v888 = vsel %vm853, %v675, 0
      %v891 = vsel %vm853, %v676, 0
      %893 = vmatprep.subr.mxu0 0.0
      %894 = vmatpush1.msra.mxu0 0.0
      %895 = vmatprep.subr.mxu0 0.0
      %896 = vmatpush1.msra.mxu0 0.0
      %897 = vmatprep.subr.mxu0 0.0
      %898 = vmatpush1.msra.mxu0 0.0
      %899 = vmatprep.subr.mxu0 0.0
      %900 = vmatpush1.msra.mxu0 0.0
      %901 = vmatprep.subr.mxu0 0.0
      %902 = vmatpush1.msra.mxu0 0.0
      %903 = vmatprep.subr.mxu0 0.0
      %904 = vmatpush1.msra.mxu0 0.0
      %905 = vmatprep.subr.mxu0 0.0
      %906 = vmatpush1.msra.mxu0 0.0
      %907 = vmatprep.subr.mxu0 0.0
      %908 = vmatpush1.msra.mxu0 0.0
      %909 = vmatprep.subr.mxu0 0.0
      %910 = vmatpush1.msra.mxu0 0.0
      %911 = vmatprep.subr.mxu0 0.0
      %912 = vmatpush1.msra.mxu0 0.0
      %913 = vmatprep.subr.mxu0 0.0
      %914 = vmatpush1.msra.mxu0 0.0
      %915 = vmatprep.subr.mxu0 0.0
      %916 = vmatpush1.msra.mxu0 0.0
      %917 = vmatprep.subr.mxu0 0.0
      %918 = vmatpush1.msra.mxu0 %v680
      %919 = vmatprep.subr.mxu0 0.0
      %920 = vmatpush1.msra.mxu0 %v679
      %921 = vmatprep.subr.mxu0 0.0
      %922 = vmatpush1.msra.mxu0 %v678
      %923 = vmatprep.subr.mxu0 0.0
      %924 = vmatpush1.msra.mxu0 %v677
      %925 = vmatprep.subr.mxu0 0.0
      %926 = vmatpush2.msra.mxu0 0.0
      %927 = vmatprep.subr.mxu0 0.0
      %928 = vmatpush2.msra.mxu0 0.0
      %929 = vmatprep.subr.mxu0 0.0
      %930 = vmatpush2.msra.mxu0 0.0
      %931 = vmatprep.subr.mxu0 0.0
      %932 = vmatpush2.msra.mxu0 0.0
      %933 = vmatprep.subr.mxu0 0.0
      %934 = vmatpush2.msra.mxu0 0.0
      %935 = vmatprep.subr.mxu0 0.0
      %936 = vmatpush2.msra.mxu0 0.0
      %937 = vmatprep.subr.mxu0 0.0
      %938 = vmatpush2.msra.mxu0 0.0
      %939 = vmatprep.subr.mxu0 0.0
      %940 = vmatpush2.msra.mxu0 0.0
      %941 = vmatprep.subr.mxu0 0.0
      %942 = vmatpush2.msra.mxu0 0.0
      %943 = vmatprep.subr.mxu0 0.0
      %944 = vmatpush2.msra.mxu0 0.0
      %945 = vmatprep.subr.mxu0 0.0
      %946 = vmatpush2.msra.mxu0 0.0
      %947 = vmatprep.subr.mxu0 0.0
      %948 = vmatpush2.msra.mxu0 0.0
      %949 = vmatprep.subr.mxu0 0.0
      %950 = vmatpush2.msra.mxu0 0.0
      %951 = vmatprep.subr.mxu0 0.0
      %952 = vmatpush2.msra.mxu0 0.0
      %953 = vmatprep.subr.mxu0 0.0
      %954 = vmatpush2.msra.mxu0 0.0
      %955 = vmatprep.subr.mxu0 0.0
      %956 = vmatpush2.msra.mxu0 0.0
      %957 = vmatprep.mubr.f32.mxu0 0.0
      %958 = vmatmul.mubr.f32.gmra.mxu0 %v855
      %v959 = vpop.f32.mrf.mxu0
      %v960 = vadd.f32 %v790, %v959
      %v961 = vpop.f32.mrf.mxu0
      %962 = vmatprep.mubr.f32.mxu0 0.0
      %963 = vmatmul.mubr.f32.gmra.mxu0 %v858
      %v964 = vpop.f32.mrf.mxu0
      %v965 = vadd.f32 %v795, %v964
      %v966 = vpop.f32.mrf.mxu0
      %967 = vmatprep.mubr.f32.mxu0 0.0
      %968 = vmatmul.mubr.f32.gmra.mxu0 %v861
      %v969 = vpop.f32.mrf.mxu0
      %v970 = vadd.f32 %v800, %v969
      %v971 = vpop.f32.mrf.mxu0
      %972 = vmatprep.mubr.f32.mxu0 0.0
      %973 = vmatmul.mubr.f32.gmra.mxu0 %v864
      %v974 = vpop.f32.mrf.mxu0
      %v975 = vadd.f32 %v805, %v974
      %v976 = vpop.f32.mrf.mxu0
      %977 = vmatprep.mubr.f32.mxu0 0.0
      %978 = vmatmul.mubr.f32.gmra.mxu0 %v867
      %v979 = vpop.f32.mrf.mxu0
      %v980 = vadd.f32 %v810, %v979
      %v981 = vpop.f32.mrf.mxu0
      %982 = vmatprep.mubr.f32.mxu0 0.0
      %983 = vmatmul.mubr.f32.gmra.mxu0 %v870
      %v984 = vpop.f32.mrf.mxu0
      %v985 = vadd.f32 %v815, %v984
      %v986 = vpop.f32.mrf.mxu0
      %987 = vmatprep.mubr.f32.mxu0 0.0
      %988 = vmatmul.mubr.f32.gmra.mxu0 %v873
      %v989 = vpop.f32.mrf.mxu0
      %v990 = vadd.f32 %v820, %v989
      %v991 = vpop.f32.mrf.mxu0
      %992 = vmatprep.mubr.f32.mxu0 0.0
      %993 = vmatmul.mubr.f32.gmra.mxu0 %v876
      %v994 = vpop.f32.mrf.mxu0
      %v995 = vadd.f32 %v825, %v994
      %v996 = vpop.f32.mrf.mxu0
      %997 = vmatprep.mubr.f32.mxu0 0.0
      %998 = vmatmul.mubr.f32.gmra.mxu0 %v879
      %v999 = vpop.f32.mrf.mxu0
      %v1000 = vadd.f32 %v830, %v999
      %v1001 = vpop.f32.mrf.mxu0
      %1002 = vmatprep.mubr.f32.mxu0 0.0
      %1003 = vmatmul.mubr.f32.gmra.mxu0 %v882
      %v1004 = vpop.f32.mrf.mxu0
      %v1005 = vadd.f32 %v835, %v1004
      %v1006 = vpop.f32.mrf.mxu0
      %1007 = vmatprep.mubr.f32.mxu0 0.0
      %1008 = vmatmul.mubr.f32.gmra.mxu0 %v885
      %v1009 = vpop.f32.mrf.mxu0
      %v1010 = vadd.f32 %v840, %v1009
      %v1011 = vpop.f32.mrf.mxu0
      %1012 = vmatprep.mubr.f32.mxu0 0.0
      %1013 = vmatmul.mubr.f32.gmra.mxu0 %v888
      %v1014 = vpop.f32.mrf.mxu0
      %v1015 = vadd.f32 %v845, %v1014
      %v1016 = vpop.f32.mrf.mxu0
      %1017 = vmatprep.mubr.f32.mxu0 0.0
      %1018 = vmatmul.mubr.f32.gmra.mxu0 %v891
      %v1019 = vpop.f32.mrf.mxu0
      %v1020 = vadd.f32 %v850, %v1019
      %v1021 = vpop.f32.mrf.mxu0
      %1022 = vdwg.mxu0
      %v1023 = vld [vmem:[%s4] sm:$0xff]
      %v1024 = vld [vmem:[%s4 + $0x8] sm:$0xff]
      %v1026 = vsel %vm683, %v651, 0
      %v1029 = vsel %vm683, %v652, 0
      %v1032 = vsel %vm683, %v653, 0
      %v1035 = vsel %vm683, %v654, 0
      %v1038 = vsel %vm683, %v655, 0
      %v1041 = vsel %vm683, %v656, 0
      %v1044 = vsel %vm683, %v657, 0
      %v1047 = vsel %vm683, %v658, 0
      %v1050 = vsel %vm683, %v659, 0
      %v1053 = vsel %vm683, %v660, 0
      %v1056 = vsel %vm683, %v661, 0
      %v1059 = vsel %vm683, %v662, 0
      %v1062 = vsel %vm683, %v663, 0
      %1064 = vmatprep.subr.mxu0 0.0
      %1065 = vmatpush1.msra.mxu0 0.0
      %1066 = vmatprep.subr.mxu0 0.0
      %1067 = vmatpush1.msra.mxu0 0.0
      %1068 = vmatprep.subr.mxu0 0.0
      %1069 = vmatpush1.msra.mxu0 0.0
      %1070 = vmatprep.subr.mxu0 0.0
      %1071 = vmatpush1.msra.mxu0 0.0
      %1072 = vmatprep.subr.mxu0 0.0
      %1073 = vmatpush1.msra.mxu0 0.0
      %1074 = vmatprep.subr.mxu0 0.0
      %1075 = vmatpush1.msra.mxu0 0.0
      %1076 = vmatprep.subr.mxu0 0.0
      %1077 = vmatpush1.msra.mxu0 0.0
      %1078 = vmatprep.subr.mxu0 0.0
      %1079 = vmatpush1.msra.mxu0 0.0
      %1080 = vmatprep.subr.mxu0 0.0
      %1081 = vmatpush1.msra.mxu0 0.0
      %1082 = vmatprep.subr.mxu0 0.0
      %1083 = vmatpush1.msra.mxu0 0.0
      %1084 = vmatprep.subr.mxu0 0.0
      %1085 = vmatpush1.msra.mxu0 0.0
      %1086 = vmatprep.subr.mxu0 0.0
      %1087 = vmatpush1.msra.mxu0 0.0
      %1088 = vmatprep.subr.mxu0 0.0
      %1089 = vmatpush1.msra.mxu0 0.0
      %1090 = vmatprep.subr.mxu0 0.0
      %1091 = vmatpush1.msra.mxu0 0.0
      %1092 = vmatprep.subr.mxu0 0.0
      %1093 = vmatpush1.msra.mxu0 %v1024
      %1094 = vmatprep.subr.mxu0 0.0
      %1095 = vmatpush1.msra.mxu0 %v1023
      %1096 = vmatprep.subr.mxu0 0.0
      %1097 = vmatpush2.msra.mxu0 0.0
      %1098 = vmatprep.subr.mxu0 0.0
      %1099 = vmatpush2.msra.mxu0 0.0
      %1100 = vmatprep.subr.mxu0 0.0
      %1101 = vmatpush2.msra.mxu0 0.0
      %1102 = vmatprep.subr.mxu0 0.0
      %1103 = vmatpush2.msra.mxu0 0.0
      %1104 = vmatprep.subr.mxu0 0.0
      %1105 = vmatpush2.msra.mxu0 0.0
      %1106 = vmatprep.subr.mxu0 0.0
      %1107 = vmatpush2.msra.mxu0 0.0
      %1108 = vmatprep.subr.mxu0 0.0
      %1109 = vmatpush2.msra.mxu0 0.0
      %1110 = vmatprep.subr.mxu0 0.0
      %1111 = vmatpush2.msra.mxu0 0.0
      %1112 = vmatprep.subr.mxu0 0.0
      %1113 = vmatpush2.msra.mxu0 0.0
      %1114 = vmatprep.subr.mxu0 0.0
      %1115 = vmatpush2.msra.mxu0 0.0
      %1116 = vmatprep.subr.mxu0 0.0
      %1117 = vmatpush2.msra.mxu0 0.0
      %1118 = vmatprep.subr.mxu0 0.0
      %1119 = vmatpush2.msra.mxu0 0.0
      %1120 = vmatprep.subr.mxu0 0.0
      %1121 = vmatpush2.msra.mxu0 0.0
      %1122 = vmatprep.subr.mxu0 0.0
      %1123 = vmatpush2.msra.mxu0 0.0
      %1124 = vmatprep.subr.mxu0 0.0
      %1125 = vmatpush2.msra.mxu0 0.0
      %1126 = vmatprep.subr.mxu0 0.0
      %1127 = vmatpush2.msra.mxu0 0.0
      %1128 = vmatprep.mubr.f32.mxu0 0.0
      %1129 = vmatmul.mubr.f32.gmra.mxu0 %v1026
      %v1130 = vpop.f32.mrf.mxu0
      %v1131 = vadd.f32 0.0, %v1130
      %v1132 = vpop.f32.mrf.mxu0
      %1133 = vmatprep.mubr.f32.mxu0 0.0
      %1134 = vmatmul.mubr.f32.gmra.mxu0 %v1029
      %v1135 = vpop.f32.mrf.mxu0
      %v1136 = vadd.f32 0.0, %v1135
      %v1137 = vpop.f32.mrf.mxu0
      %1138 = vmatprep.mubr.f32.mxu0 0.0
      %1139 = vmatmul.mubr.f32.gmra.mxu0 %v1032
      %v1140 = vpop.f32.mrf.mxu0
      %v1141 = vadd.f32 0.0, %v1140
      %v1142 = vpop.f32.mrf.mxu0
      %1143 = vmatprep.mubr.f32.mxu0 0.0
      %1144 = vmatmul.mubr.f32.gmra.mxu0 %v1035
      %v1145 = vpop.f32.mrf.mxu0
      %v1146 = vadd.f32 0.0, %v1145
      %v1147 = vpop.f32.mrf.mxu0
      %1148 = vmatprep.mubr.f32.mxu0 0.0
      %1149 = vmatmul.mubr.f32.gmra.mxu0 %v1038
      %v1150 = vpop.f32.mrf.mxu0
      %v1151 = vadd.f32 0.0, %v1150
      %v1152 = vpop.f32.mrf.mxu0
      %1153 = vmatprep.mubr.f32.mxu0 0.0
      %1154 = vmatmul.mubr.f32.gmra.mxu0 %v1041
      %v1155 = vpop.f32.mrf.mxu0
      %v1156 = vadd.f32 0.0, %v1155
      %v1157 = vpop.f32.mrf.mxu0
      %1158 = vmatprep.mubr.f32.mxu0 0.0
      %1159 = vmatmul.mubr.f32.gmra.mxu0 %v1044
      %v1160 = vpop.f32.mrf.mxu0
      %v1161 = vadd.f32 0.0, %v1160
      %v1162 = vpop.f32.mrf.mxu0
      %1163 = vmatprep.mubr.f32.mxu0 0.0
      %1164 = vmatmul.mubr.f32.gmra.mxu0 %v1047
      %v1165 = vpop.f32.mrf.mxu0
      %v1166 = vadd.f32 0.0, %v1165
      %v1167 = vpop.f32.mrf.mxu0
      %1168 = vmatprep.mubr.f32.mxu0 0.0
      %1169 = vmatmul.mubr.f32.gmra.mxu0 %v1050
      %v1170 = vpop.f32.mrf.mxu0
      %v1171 = vadd.f32 0.0, %v1170
      %v1172 = vpop.f32.mrf.mxu0
      %1173 = vmatprep.mubr.f32.mxu0 0.0
      %1174 = vmatmul.mubr.f32.gmra.mxu0 %v1053
      %v1175 = vpop.f32.mrf.mxu0
      %v1176 = vadd.f32 0.0, %v1175
      %v1177 = vpop.f32.mrf.mxu0
      %1178 = vmatprep.mubr.f32.mxu0 0.0
      %1179 = vmatmul.mubr.f32.gmra.mxu0 %v1056
      %v1180 = vpop.f32.mrf.mxu0
      %v1181 = vadd.f32 0.0, %v1180
      %v1182 = vpop.f32.mrf.mxu0
      %1183 = vmatprep.mubr.f32.mxu0 0.0
      %1184 = vmatmul.mubr.f32.gmra.mxu0 %v1059
      %v1185 = vpop.f32.mrf.mxu0
      %v1186 = vadd.f32 0.0, %v1185
      %v1187 = vpop.f32.mrf.mxu0
      %1188 = vmatprep.mubr.f32.mxu0 0.0
      %1189 = vmatmul.mubr.f32.gmra.mxu0 %v1062
      %v1190 = vpop.f32.mrf.mxu0
      %v1191 = vadd.f32 0.0, %v1190
      %v1192 = vpop.f32.mrf.mxu0
      %1193 = vdwg.mxu0
      %v1194 = vadd.f32 %v960, %v1131
      %v1195 = vadd.f32 %v965, %v1136
      %v1196 = vadd.f32 %v970, %v1141
      %v1197 = vadd.f32 %v975, %v1146
      %v1198 = vadd.f32 %v980, %v1151
      %v1199 = vadd.f32 %v985, %v1156
      %v1200 = vadd.f32 %v990, %v1161
      %v1201 = vadd.f32 %v995, %v1166
      %v1202 = vadd.f32 %v1000, %v1171
      %v1203 = vadd.f32 %v1005, %v1176
      %v1204 = vadd.f32 %v1010, %v1181
      %v1205 = vadd.f32 %v1015, %v1186
      %v1206 = vadd.f32 %v1020, %v1191
      %v1207 = vld [vmem:[%s5] sm:$0x1]
      %v1209 = vlaneseq
      %v1210 = vshrl.u32 %v1209, 7
      %v1211 = vsub.s32 0, %v1210
      %v1212 = vrot.slane %v1207, %v1211
      %v1214 = vadd.f32 %v1194, %v1212
      %v1215 = vadd.f32 %v1195, %v1212
      %v1216 = vadd.f32 %v1196, %v1212
      %v1217 = vadd.f32 %v1197, %v1212
      %v1218 = vadd.f32 %v1198, %v1212
      %v1219 = vadd.f32 %v1199, %v1212
      %v1220 = vadd.f32 %v1200, %v1212
      %v1221 = vadd.f32 %v1201, %v1212
      %v1222 = vadd.f32 %v1202, %v1212
      %v1223 = vadd.f32 %v1203, %v1212
      %v1224 = vadd.f32 %v1204, %v1212
      %v1225 = vadd.f32 %v1205, %v1212
      %v1226 = vadd.f32 %v1206, %v1212
      %v1227 = vmax.f32 %v1214, 0.0
      %v1228 = vmax.f32 %v1215, 0.0
      %v1229 = vmax.f32 %v1216, 0.0
      %v1230 = vmax.f32 %v1217, 0.0
      %v1231 = vmax.f32 %v1218, 0.0
      %v1232 = vmax.f32 %v1219, 0.0
      %v1233 = vmax.f32 %v1220, 0.0
      %v1234 = vmax.f32 %v1221, 0.0
      %v1235 = vmax.f32 %v1222, 0.0
      %v1236 = vmax.f32 %v1223, 0.0
      %v1237 = vmax.f32 %v1224, 0.0
      %v1238 = vmax.f32 %v1225, 0.0
      %v1239 = vmax.f32 %v1226, 0.0
      %v1240 = vld [vmem:[%s6] sm:$0xff]
      %v1241 = vld [vmem:[%s6 + $0x8] sm:$0xff]
      %v1242 = vld [vmem:[%s6 + $0x10] sm:$0xff]
      %v1243 = vld [vmem:[%s6 + $0x18] sm:$0xff]
      %v1244 = vld [vmem:[%s6 + $0x20] sm:$0xff]
      %v1245 = vld [vmem:[%s6 + $0x28] sm:$0xff]
      %v1246 = vld [vmem:[%s6 + $0x30] sm:$0xff]
      %v1247 = vld [vmem:[%s6 + $0x38] sm:$0xff]
      %v1248 = vld [vmem:[%s7] sm:$0x1]
      %v1250 = vlaneseq
      %v1251 = vshrl.u32 %v1250, 7
      %v1252 = vsub.s32 0, %v1251
      %v1253 = vrot.slane %v1248, %v1252
      %vm1255 = vcmask 523264
      %v1257 = vsel %vm1255, %v1227, 0
      %v1260 = vsel %vm1255, %v1228, 0
      %v1263 = vsel %vm1255, %v1229, 0
      %v1266 = vsel %vm1255, %v1230, 0
      %v1269 = vsel %vm1255, %v1231, 0
      %v1272 = vsel %vm1255, %v1232, 0
      %v1275 = vsel %vm1255, %v1233, 0
      %v1278 = vsel %vm1255, %v1234, 0
      %v1281 = vsel %vm1255, %v1235, 0
      %v1284 = vsel %vm1255, %v1236, 0
      %v1287 = vsel %vm1255, %v1237, 0
      %v1290 = vsel %vm1255, %v1238, 0
      %v1293 = vsel %vm1255, %v1239, 0
      %1295 = vmatprep.subr.mxu0 0.0
      %1296 = vmatpush1.msra.mxu0 0.0
      %1297 = vmatprep.subr.mxu0 0.0
      %1298 = vmatpush1.msra.mxu0 0.0
      %1299 = vmatprep.subr.mxu0 0.0
      %1300 = vmatpush1.msra.mxu0 0.0
      %1301 = vmatprep.subr.mxu0 0.0
      %1302 = vmatpush1.msra.mxu0 0.0
      %1303 = vmatprep.subr.mxu0 0.0
      %1304 = vmatpush1.msra.mxu0 0.0
      %1305 = vmatprep.subr.mxu0 0.0
      %1306 = vmatpush1.msra.mxu0 0.0
      %1307 = vmatprep.subr.mxu0 0.0
      %1308 = vmatpush1.msra.mxu0 0.0
      %1309 = vmatprep.subr.mxu0 0.0
      %1310 = vmatpush1.msra.mxu0 0.0
      %1311 = vmatprep.subr.mxu0 0.0
      %1312 = vmatpush1.msra.mxu0 %v1247
      %1313 = vmatprep.subr.mxu0 0.0
      %1314 = vmatpush1.msra.mxu0 %v1246
      %1315 = vmatprep.subr.mxu0 0.0
      %1316 = vmatpush1.msra.mxu0 %v1245
      %1317 = vmatprep.subr.mxu0 0.0
      %1318 = vmatpush1.msra.mxu0 %v1244
      %1319 = vmatprep.subr.mxu0 0.0
      %1320 = vmatpush1.msra.mxu0 %v1243
      %1321 = vmatprep.subr.mxu0 0.0
      %1322 = vmatpush1.msra.mxu0 %v1242
      %1323 = vmatprep.subr.mxu0 0.0
      %1324 = vmatpush1.msra.mxu0 %v1241
      %1325 = vmatprep.subr.mxu0 0.0
      %1326 = vmatpush1.msra.mxu0 %v1240
      %1327 = vmatprep.subr.mxu0 0.0
      %1328 = vmatpush2.msra.mxu0 0.0
      %1329 = vmatprep.subr.mxu0 0.0
      %1330 = vmatpush2.msra.mxu0 0.0
      %1331 = vmatprep.subr.mxu0 0.0
      %1332 = vmatpush2.msra.mxu0 0.0
      %1333 = vmatprep.subr.mxu0 0.0
      %1334 = vmatpush2.msra.mxu0 0.0
      %1335 = vmatprep.subr.mxu0 0.0
      %1336 = vmatpush2.msra.mxu0 0.0
      %1337 = vmatprep.subr.mxu0 0.0
      %1338 = vmatpush2.msra.mxu0 0.0
      %1339 = vmatprep.subr.mxu0 0.0
      %1340 = vmatpush2.msra.mxu0 0.0
      %1341 = vmatprep.subr.mxu0 0.0
      %1342 = vmatpush2.msra.mxu0 0.0
      %1343 = vmatprep.subr.mxu0 0.0
      %1344 = vmatpush2.msra.mxu0 0.0
      %1345 = vmatprep.subr.mxu0 0.0
      %1346 = vmatpush2.msra.mxu0 0.0
      %1347 = vmatprep.subr.mxu0 0.0
      %1348 = vmatpush2.msra.mxu0 0.0
      %1349 = vmatprep.subr.mxu0 0.0
      %1350 = vmatpush2.msra.mxu0 0.0
      %1351 = vmatprep.subr.mxu0 0.0
      %1352 = vmatpush2.msra.mxu0 0.0
      %1353 = vmatprep.subr.mxu0 0.0
      %1354 = vmatpush2.msra.mxu0 0.0
      %1355 = vmatprep.subr.mxu0 0.0
      %1356 = vmatpush2.msra.mxu0 0.0
      %1357 = vmatprep.subr.mxu0 0.0
      %1358 = vmatpush2.msra.mxu0 0.0
      %1359 = vmatprep.mubr.f32.mxu0 0.0
      %1360 = vmatmul.mubr.f32.gmra.mxu0 %v1257
      %v1361 = vpop.f32.mrf.mxu0
      %v1362 = vadd.f32 %v1253, %v1361
      %v1363 = vpop.f32.mrf.mxu0
      %1364 = vmatprep.mubr.f32.mxu0 0.0
      %1365 = vmatmul.mubr.f32.gmra.mxu0 %v1260
      %v1366 = vpop.f32.mrf.mxu0
      %v1367 = vadd.f32 %v1253, %v1366
      %v1368 = vpop.f32.mrf.mxu0
      %1369 = vmatprep.mubr.f32.mxu0 0.0
      %1370 = vmatmul.mubr.f32.gmra.mxu0 %v1263
      %v1371 = vpop.f32.mrf.mxu0
      %v1372 = vadd.f32 %v1253, %v1371
      %v1373 = vpop.f32.mrf.mxu0
      %1374 = vmatprep.mubr.f32.mxu0 0.0
      %1375 = vmatmul.mubr.f32.gmra.mxu0 %v1266
      %v1376 = vpop.f32.mrf.mxu0
      %v1377 = vadd.f32 %v1253, %v1376
      %v1378 = vpop.f32.mrf.mxu0
      %1379 = vmatprep.mubr.f32.mxu0 0.0
      %1380 = vmatmul.mubr.f32.gmra.mxu0 %v1269
      %v1381 = vpop.f32.mrf.mxu0
      %v1382 = vadd.f32 %v1253, %v1381
      %v1383 = vpop.f32.mrf.mxu0
      %1384 = vmatprep.mubr.f32.mxu0 0.0
      %1385 = vmatmul.mubr.f32.gmra.mxu0 %v1272
      %v1386 = vpop.f32.mrf.mxu0
      %v1387 = vadd.f32 %v1253, %v1386
      %v1388 = vpop.f32.mrf.mxu0
      %1389 = vmatprep.mubr.f32.mxu0 0.0
      %1390 = vmatmul.mubr.f32.gmra.mxu0 %v1275
      %v1391 = vpop.f32.mrf.mxu0
      %v1392 = vadd.f32 %v1253, %v1391
      %v1393 = vpop.f32.mrf.mxu0
      %1394 = vmatprep.mubr.f32.mxu0 0.0
      %1395 = vmatmul.mubr.f32.gmra.mxu0 %v1278
      %v1396 = vpop.f32.mrf.mxu0
      %v1397 = vadd.f32 %v1253, %v1396
      %v1398 = vpop.f32.mrf.mxu0
      %1399 = vmatprep.mubr.f32.mxu0 0.0
      %1400 = vmatmul.mubr.f32.gmra.mxu0 %v1281
      %v1401 = vpop.f32.mrf.mxu0
      %v1402 = vadd.f32 %v1253, %v1401
      %v1403 = vpop.f32.mrf.mxu0
      %1404 = vmatprep.mubr.f32.mxu0 0.0
      %1405 = vmatmul.mubr.f32.gmra.mxu0 %v1284
      %v1406 = vpop.f32.mrf.mxu0
      %v1407 = vadd.f32 %v1253, %v1406
      %v1408 = vpop.f32.mrf.mxu0
      %1409 = vmatprep.mubr.f32.mxu0 0.0
      %1410 = vmatmul.mubr.f32.gmra.mxu0 %v1287
      %v1411 = vpop.f32.mrf.mxu0
      %v1412 = vadd.f32 %v1253, %v1411
      %v1413 = vpop.f32.mrf.mxu0
      %1414 = vmatprep.mubr.f32.mxu0 0.0
      %1415 = vmatmul.mubr.f32.gmra.mxu0 %v1290
      %v1416 = vpop.f32.mrf.mxu0
      %v1417 = vadd.f32 %v1253, %v1416
      %v1418 = vpop.f32.mrf.mxu0
      %1419 = vmatprep.mubr.f32.mxu0 0.0
      %1420 = vmatmul.mubr.f32.gmra.mxu0 %v1293
      %v1421 = vpop.f32.mrf.mxu0
      %v1422 = vadd.f32 %v1253, %v1421
      %v1423 = vpop.f32.mrf.mxu0
      %1424 = vdwg.mxu0
      %v1425 = vmax.f32 %v1362, 0.0
      %v1426 = vmax.f32 %v1367, 0.0
      %v1427 = vmax.f32 %v1372, 0.0
      %v1428 = vmax.f32 %v1377, 0.0
      %v1429 = vmax.f32 %v1382, 0.0
      %v1430 = vmax.f32 %v1387, 0.0
      %v1431 = vmax.f32 %v1392, 0.0
      %v1432 = vmax.f32 %v1397, 0.0
      %v1433 = vmax.f32 %v1402, 0.0
      %v1434 = vmax.f32 %v1407, 0.0
      %v1435 = vmax.f32 %v1412, 0.0
      %v1436 = vmax.f32 %v1417, 0.0
      %v1437 = vmax.f32 %v1422, 0.0
      %v1438 = vld [vmem:[%s8] sm:$0xff]
      %v1439 = vld [vmem:[%s8 + $0x8] sm:$0xff]
      %v1440 = vld [vmem:[%s8 + $0x10] sm:$0xff]
      %v1441 = vld [vmem:[%s8 + $0x18] sm:$0xff]
      %v1442 = vld [vmem:[%s8 + $0x20] sm:$0xff]
      %v1443 = vld [vmem:[%s8 + $0x28] sm:$0xff]
      %v1444 = vld [vmem:[%s8 + $0x30] sm:$0xff]
      %v1445 = vld [vmem:[%s8 + $0x38] sm:$0xff]
      %1446 = vmatprep.subr.mxu0 0.0
      %1447 = vmatpush1.msra.mxu0 0.0
      %1448 = vmatprep.subr.mxu0 0.0
      %1449 = vmatpush1.msra.mxu0 0.0
      %1450 = vmatprep.subr.mxu0 0.0
      %1451 = vmatpush1.msra.mxu0 0.0
      %1452 = vmatprep.subr.mxu0 0.0
      %1453 = vmatpush1.msra.mxu0 0.0
      %1454 = vmatprep.subr.mxu0 0.0
      %1455 = vmatpush1.msra.mxu0 0.0
      %1456 = vmatprep.subr.mxu0 0.0
      %1457 = vmatpush1.msra.mxu0 0.0
      %1458 = vmatprep.subr.mxu0 0.0
      %1459 = vmatpush1.msra.mxu0 0.0
      %1460 = vmatprep.subr.mxu0 0.0
      %1461 = vmatpush1.msra.mxu0 0.0
      %1462 = vmatprep.subr.mxu0 0.0
      %1463 = vmatpush1.msra.mxu0 0.0
      %1464 = vmatprep.subr.mxu0 0.0
      %1465 = vmatpush1.msra.mxu0 0.0
      %1466 = vmatprep.subr.mxu0 0.0
      %1467 = vmatpush1.msra.mxu0 0.0
      %1468 = vmatprep.subr.mxu0 0.0
      %1469 = vmatpush1.msra.mxu0 0.0
      %1470 = vmatprep.subr.mxu0 0.0
      %1471 = vmatpush1.msra.mxu0 %v1441
      %1472 = vmatprep.subr.mxu0 0.0
      %1473 = vmatpush1.msra.mxu0 %v1440
      %1474 = vmatprep.subr.mxu0 0.0
      %1475 = vmatpush1.msra.mxu0 %v1439
      %1476 = vmatprep.subr.mxu0 0.0
      %1477 = vmatpush1.msra.mxu0 %v1438
      %1478 = vmatprep.subr.mxu0 0.0
      %1479 = vmatpush2.msra.mxu0 0.0
      %1480 = vmatprep.subr.mxu0 0.0
      %1481 = vmatpush2.msra.mxu0 0.0
      %1482 = vmatprep.subr.mxu0 0.0
      %1483 = vmatpush2.msra.mxu0 0.0
      %1484 = vmatprep.subr.mxu0 0.0
      %1485 = vmatpush2.msra.mxu0 0.0
      %1486 = vmatprep.subr.mxu0 0.0
      %1487 = vmatpush2.msra.mxu0 0.0
      %1488 = vmatprep.subr.mxu0 0.0
      %1489 = vmatpush2.msra.mxu0 0.0
      %1490 = vmatprep.subr.mxu0 0.0
      %1491 = vmatpush2.msra.mxu0 0.0
      %1492 = vmatprep.subr.mxu0 0.0
      %1493 = vmatpush2.msra.mxu0 0.0
      %1494 = vmatprep.subr.mxu0 0.0
      %1495 = vmatpush2.msra.mxu0 0.0
      %1496 = vmatprep.subr.mxu0 0.0
      %1497 = vmatpush2.msra.mxu0 0.0
      %1498 = vmatprep.subr.mxu0 0.0
      %1499 = vmatpush2.msra.mxu0 0.0
      %1500 = vmatprep.subr.mxu0 0.0
      %1501 = vmatpush2.msra.mxu0 0.0
      %1502 = vmatprep.subr.mxu0 0.0
      %1503 = vmatpush2.msra.mxu0 0.0
      %1504 = vmatprep.subr.mxu0 0.0
      %1505 = vmatpush2.msra.mxu0 0.0
      %1506 = vmatprep.subr.mxu0 0.0
      %1507 = vmatpush2.msra.mxu0 0.0
      %1508 = vmatprep.subr.mxu0 0.0
      %1509 = vmatpush2.msra.mxu0 0.0
      %1510 = vmatprep.mubr.f32.mxu0 0.0
      %1511 = vmatmul.mubr.f32.gmra.mxu0 %v855
      %v1512 = vpop.f32.mrf.mxu0
      %v1513 = vadd.f32 0.0, %v1512
      %v1514 = vpop.f32.mrf.mxu0
      %1515 = vmatprep.mubr.f32.mxu0 0.0
      %1516 = vmatmul.mubr.f32.gmra.mxu0 %v858
      %v1517 = vpop.f32.mrf.mxu0
      %v1518 = vadd.f32 0.0, %v1517
      %v1519 = vpop.f32.mrf.mxu0
      %1520 = vmatprep.mubr.f32.mxu0 0.0
      %1521 = vmatmul.mubr.f32.gmra.mxu0 %v861
      %v1522 = vpop.f32.mrf.mxu0
      %v1523 = vadd.f32 0.0, %v1522
      %v1524 = vpop.f32.mrf.mxu0
      %1525 = vmatprep.mubr.f32.mxu0 0.0
      %1526 = vmatmul.mubr.f32.gmra.mxu0 %v864
      %v1527 = vpop.f32.mrf.mxu0
      %v1528 = vadd.f32 0.0, %v1527
      %v1529 = vpop.f32.mrf.mxu0
      %1530 = vmatprep.mubr.f32.mxu0 0.0
      %1531 = vmatmul.mubr.f32.gmra.mxu0 %v867
      %v1532 = vpop.f32.mrf.mxu0
      %v1533 = vadd.f32 0.0, %v1532
      %v1534 = vpop.f32.mrf.mxu0
      %1535 = vmatprep.mubr.f32.mxu0 0.0
      %1536 = vmatmul.mubr.f32.gmra.mxu0 %v870
      %v1537 = vpop.f32.mrf.mxu0
      %v1538 = vadd.f32 0.0, %v1537
      %v1539 = vpop.f32.mrf.mxu0
      %1540 = vmatprep.mubr.f32.mxu0 0.0
      %1541 = vmatmul.mubr.f32.gmra.mxu0 %v873
      %v1542 = vpop.f32.mrf.mxu0
      %v1543 = vadd.f32 0.0, %v1542
      %v1544 = vpop.f32.mrf.mxu0
      %1545 = vmatprep.mubr.f32.mxu0 0.0
      %1546 = vmatmul.mubr.f32.gmra.mxu0 %v876
      %v1547 = vpop.f32.mrf.mxu0
      %v1548 = vadd.f32 0.0, %v1547
      %v1549 = vpop.f32.mrf.mxu0
      %1550 = vmatprep.mubr.f32.mxu0 0.0
      %1551 = vmatmul.mubr.f32.gmra.mxu0 %v879
      %v1552 = vpop.f32.mrf.mxu0
      %v1553 = vadd.f32 0.0, %v1552
      %v1554 = vpop.f32.mrf.mxu0
      %1555 = vmatprep.mubr.f32.mxu0 0.0
      %1556 = vmatmul.mubr.f32.gmra.mxu0 %v882
      %v1557 = vpop.f32.mrf.mxu0
      %v1558 = vadd.f32 0.0, %v1557
      %v1559 = vpop.f32.mrf.mxu0
      %1560 = vmatprep.mubr.f32.mxu0 0.0
      %1561 = vmatmul.mubr.f32.gmra.mxu0 %v885
      %v1562 = vpop.f32.mrf.mxu0
      %v1563 = vadd.f32 0.0, %v1562
      %v1564 = vpop.f32.mrf.mxu0
      %1565 = vmatprep.mubr.f32.mxu0 0.0
      %1566 = vmatmul.mubr.f32.gmra.mxu0 %v888
      %v1567 = vpop.f32.mrf.mxu0
      %v1568 = vadd.f32 0.0, %v1567
      %v1569 = vpop.f32.mrf.mxu0
      %1570 = vmatprep.mubr.f32.mxu0 0.0
      %1571 = vmatmul.mubr.f32.gmra.mxu0 %v891
      %v1572 = vpop.f32.mrf.mxu0
      %v1573 = vadd.f32 0.0, %v1572
      %v1574 = vpop.f32.mrf.mxu0
      %1575 = vdwg.mxu0
      %v1577 = vsel %vm1255, %v1425, 0
      %v1580 = vsel %vm1255, %v1426, 0
      %v1583 = vsel %vm1255, %v1427, 0
      %v1586 = vsel %vm1255, %v1428, 0
      %v1589 = vsel %vm1255, %v1429, 0
      %v1592 = vsel %vm1255, %v1430, 0
      %v1595 = vsel %vm1255, %v1431, 0
      %v1598 = vsel %vm1255, %v1432, 0
      %v1601 = vsel %vm1255, %v1433, 0
      %v1604 = vsel %vm1255, %v1434, 0
      %v1607 = vsel %vm1255, %v1435, 0
      %v1610 = vsel %vm1255, %v1436, 0
      %v1613 = vsel %vm1255, %v1437, 0
      %1615 = vmatprep.subr.mxu0 0.0
      %1616 = vmatpush1.msra.mxu0 0.0
      %1617 = vmatprep.subr.mxu0 0.0
      %1618 = vmatpush1.msra.mxu0 0.0
      %1619 = vmatprep.subr.mxu0 0.0
      %1620 = vmatpush1.msra.mxu0 0.0
      %1621 = vmatprep.subr.mxu0 0.0
      %1622 = vmatpush1.msra.mxu0 0.0
      %1623 = vmatprep.subr.mxu0 0.0
      %1624 = vmatpush1.msra.mxu0 0.0
      %1625 = vmatprep.subr.mxu0 0.0
      %1626 = vmatpush1.msra.mxu0 0.0
      %1627 = vmatprep.subr.mxu0 0.0
      %1628 = vmatpush1.msra.mxu0 0.0
      %1629 = vmatprep.subr.mxu0 0.0
      %1630 = vmatpush1.msra.mxu0 0.0
      %1631 = vmatprep.subr.mxu0 0.0
      %1632 = vmatpush1.msra.mxu0 %v1445
      %1633 = vmatprep.subr.mxu0 0.0
      %1634 = vmatpush1.msra.mxu0 %v1444
      %1635 = vmatprep.subr.mxu0 0.0
      %1636 = vmatpush1.msra.mxu0 %v1443
      %1637 = vmatprep.subr.mxu0 0.0
      %1638 = vmatpush1.msra.mxu0 %v1442
      %1639 = vmatprep.subr.mxu0 0.0
      %1640 = vmatpush1.msra.mxu0 %v1441
      %1641 = vmatprep.subr.mxu0 0.0
      %1642 = vmatpush1.msra.mxu0 %v1440
      %1643 = vmatprep.subr.mxu0 0.0
      %1644 = vmatpush1.msra.mxu0 %v1439
      %1645 = vmatprep.subr.mxu0 0.0
      %1646 = vmatpush1.msra.mxu0 %v1438
      %1647 = vmatprep.subr.mxu0 0.0
      %1648 = vmatpush2.msra.mxu0 0.0
      %1649 = vmatprep.subr.mxu0 0.0
      %1650 = vmatpush2.msra.mxu0 0.0
      %1651 = vmatprep.subr.mxu0 0.0
      %1652 = vmatpush2.msra.mxu0 0.0
      %1653 = vmatprep.subr.mxu0 0.0
      %1654 = vmatpush2.msra.mxu0 0.0
      %1655 = vmatprep.subr.mxu0 0.0
      %1656 = vmatpush2.msra.mxu0 0.0
      %1657 = vmatprep.subr.mxu0 0.0
      %1658 = vmatpush2.msra.mxu0 0.0
      %1659 = vmatprep.subr.mxu0 0.0
      %1660 = vmatpush2.msra.mxu0 0.0
      %1661 = vmatprep.subr.mxu0 0.0
      %1662 = vmatpush2.msra.mxu0 0.0
      %1663 = vmatprep.subr.mxu0 0.0
      %1664 = vmatpush2.msra.mxu0 0.0
      %1665 = vmatprep.subr.mxu0 0.0
      %1666 = vmatpush2.msra.mxu0 0.0
      %1667 = vmatprep.subr.mxu0 0.0
      %1668 = vmatpush2.msra.mxu0 0.0
      %1669 = vmatprep.subr.mxu0 0.0
      %1670 = vmatpush2.msra.mxu0 0.0
      %1671 = vmatprep.subr.mxu0 0.0
      %1672 = vmatpush2.msra.mxu0 0.0
      %1673 = vmatprep.subr.mxu0 0.0
      %1674 = vmatpush2.msra.mxu0 0.0
      %1675 = vmatprep.subr.mxu0 0.0
      %1676 = vmatpush2.msra.mxu0 0.0
      %1677 = vmatprep.subr.mxu0 0.0
      %1678 = vmatpush2.msra.mxu0 0.0
      %1679 = vmatprep.mubr.f32.mxu0 0.0
      %1680 = vmatmul.mubr.f32.gmra.mxu0 %v1577
      %v1681 = vpop.f32.mrf.mxu0
      %v1682 = vadd.f32 %v1513, %v1681
      %v1683 = vpop.f32.mrf.mxu0
      %1684 = vmatprep.mubr.f32.mxu0 0.0
      %1685 = vmatmul.mubr.f32.gmra.mxu0 %v1580
      %v1686 = vpop.f32.mrf.mxu0
      %v1687 = vadd.f32 %v1518, %v1686
      %v1688 = vpop.f32.mrf.mxu0
      %1689 = vmatprep.mubr.f32.mxu0 0.0
      %1690 = vmatmul.mubr.f32.gmra.mxu0 %v1583
      %v1691 = vpop.f32.mrf.mxu0
      %v1692 = vadd.f32 %v1523, %v1691
      %v1693 = vpop.f32.mrf.mxu0
      %1694 = vmatprep.mubr.f32.mxu0 0.0
      %1695 = vmatmul.mubr.f32.gmra.mxu0 %v1586
      %v1696 = vpop.f32.mrf.mxu0
      %v1697 = vadd.f32 %v1528, %v1696
      %v1698 = vpop.f32.mrf.mxu0
      %1699 = vmatprep.mubr.f32.mxu0 0.0
      %1700 = vmatmul.mubr.f32.gmra.mxu0 %v1589
      %v1701 = vpop.f32.mrf.mxu0
      %v1702 = vadd.f32 %v1533, %v1701
      %v1703 = vpop.f32.mrf.mxu0
      %1704 = vmatprep.mubr.f32.mxu0 0.0
      %1705 = vmatmul.mubr.f32.gmra.mxu0 %v1592
      %v1706 = vpop.f32.mrf.mxu0
      %v1707 = vadd.f32 %v1538, %v1706
      %v1708 = vpop.f32.mrf.mxu0
      %1709 = vmatprep.mubr.f32.mxu0 0.0
      %1710 = vmatmul.mubr.f32.gmra.mxu0 %v1595
      %v1711 = vpop.f32.mrf.mxu0
      %v1712 = vadd.f32 %v1543, %v1711
      %v1713 = vpop.f32.mrf.mxu0
      %1714 = vmatprep.mubr.f32.mxu0 0.0
      %1715 = vmatmul.mubr.f32.gmra.mxu0 %v1598
      %v1716 = vpop.f32.mrf.mxu0
      %v1717 = vadd.f32 %v1548, %v1716
      %v1718 = vpop.f32.mrf.mxu0
      %1719 = vmatprep.mubr.f32.mxu0 0.0
      %1720 = vmatmul.mubr.f32.gmra.mxu0 %v1601
      %v1721 = vpop.f32.mrf.mxu0
      %v1722 = vadd.f32 %v1553, %v1721
      %v1723 = vpop.f32.mrf.mxu0
      %1724 = vmatprep.mubr.f32.mxu0 0.0
      %1725 = vmatmul.mubr.f32.gmra.mxu0 %v1604
      %v1726 = vpop.f32.mrf.mxu0
      %v1727 = vadd.f32 %v1558, %v1726
      %v1728 = vpop.f32.mrf.mxu0
      %1729 = vmatprep.mubr.f32.mxu0 0.0
      %1730 = vmatmul.mubr.f32.gmra.mxu0 %v1607
      %v1731 = vpop.f32.mrf.mxu0
      %v1732 = vadd.f32 %v1563, %v1731
      %v1733 = vpop.f32.mrf.mxu0
      %1734 = vmatprep.mubr.f32.mxu0 0.0
      %1735 = vmatmul.mubr.f32.gmra.mxu0 %v1610
      %v1736 = vpop.f32.mrf.mxu0
      %v1737 = vadd.f32 %v1568, %v1736
      %v1738 = vpop.f32.mrf.mxu0
      %1739 = vmatprep.mubr.f32.mxu0 0.0
      %1740 = vmatmul.mubr.f32.gmra.mxu0 %v1613
      %v1741 = vpop.f32.mrf.mxu0
      %v1742 = vadd.f32 %v1573, %v1741
      %v1743 = vpop.f32.mrf.mxu0
      %1744 = vdwg.mxu0
      %v1745 = vld [vmem:[%s9] sm:$0xff]
      %v1746 = vld [vmem:[%s9 + $0x8] sm:$0xff]
      %1747 = vmatprep.subr.mxu0 0.0
      %1748 = vmatpush1.msra.mxu0 0.0
      %1749 = vmatprep.subr.mxu0 0.0
      %1750 = vmatpush1.msra.mxu0 0.0
      %1751 = vmatprep.subr.mxu0 0.0
      %1752 = vmatpush1.msra.mxu0 0.0
      %1753 = vmatprep.subr.mxu0 0.0
      %1754 = vmatpush1.msra.mxu0 0.0
      %1755 = vmatprep.subr.mxu0 0.0
      %1756 = vmatpush1.msra.mxu0 0.0
      %1757 = vmatprep.subr.mxu0 0.0
      %1758 = vmatpush1.msra.mxu0 0.0
      %1759 = vmatprep.subr.mxu0 0.0
      %1760 = vmatpush1.msra.mxu0 0.0
      %1761 = vmatprep.subr.mxu0 0.0
      %1762 = vmatpush1.msra.mxu0 0.0
      %1763 = vmatprep.subr.mxu0 0.0
      %1764 = vmatpush1.msra.mxu0 0.0
      %1765 = vmatprep.subr.mxu0 0.0
      %1766 = vmatpush1.msra.mxu0 0.0
      %1767 = vmatprep.subr.mxu0 0.0
      %1768 = vmatpush1.msra.mxu0 0.0
      %1769 = vmatprep.subr.mxu0 0.0
      %1770 = vmatpush1.msra.mxu0 0.0
      %1771 = vmatprep.subr.mxu0 0.0
      %1772 = vmatpush1.msra.mxu0 0.0
      %1773 = vmatprep.subr.mxu0 0.0
      %1774 = vmatpush1.msra.mxu0 0.0
      %1775 = vmatprep.subr.mxu0 0.0
      %1776 = vmatpush1.msra.mxu0 %v1746
      %1777 = vmatprep.subr.mxu0 0.0
      %1778 = vmatpush1.msra.mxu0 %v1745
      %1779 = vmatprep.subr.mxu0 0.0
      %1780 = vmatpush2.msra.mxu0 0.0
      %1781 = vmatprep.subr.mxu0 0.0
      %1782 = vmatpush2.msra.mxu0 0.0
      %1783 = vmatprep.subr.mxu0 0.0
      %1784 = vmatpush2.msra.mxu0 0.0
      %1785 = vmatprep.subr.mxu0 0.0
      %1786 = vmatpush2.msra.mxu0 0.0
      %1787 = vmatprep.subr.mxu0 0.0
      %1788 = vmatpush2.msra.mxu0 0.0
      %1789 = vmatprep.subr.mxu0 0.0
      %1790 = vmatpush2.msra.mxu0 0.0
      %1791 = vmatprep.subr.mxu0 0.0
      %1792 = vmatpush2.msra.mxu0 0.0
      %1793 = vmatprep.subr.mxu0 0.0
      %1794 = vmatpush2.msra.mxu0 0.0
      %1795 = vmatprep.subr.mxu0 0.0
      %1796 = vmatpush2.msra.mxu0 0.0
      %1797 = vmatprep.subr.mxu0 0.0
      %1798 = vmatpush2.msra.mxu0 0.0
      %1799 = vmatprep.subr.mxu0 0.0
      %1800 = vmatpush2.msra.mxu0 0.0
      %1801 = vmatprep.subr.mxu0 0.0
      %1802 = vmatpush2.msra.mxu0 0.0
      %1803 = vmatprep.subr.mxu0 0.0
      %1804 = vmatpush2.msra.mxu0 0.0
      %1805 = vmatprep.subr.mxu0 0.0
      %1806 = vmatpush2.msra.mxu0 0.0
      %1807 = vmatprep.subr.mxu0 0.0
      %1808 = vmatpush2.msra.mxu0 0.0
      %1809 = vmatprep.subr.mxu0 0.0
      %1810 = vmatpush2.msra.mxu0 0.0
      %1811 = vmatprep.mubr.f32.mxu0 0.0
      %1812 = vmatmul.mubr.f32.gmra.mxu0 %v685
      %v1813 = vpop.f32.mrf.mxu0
      %v1814 = vadd.f32 0.0, %v1813
      %v1815 = vpop.f32.mrf.mxu0
      %1816 = vmatprep.mubr.f32.mxu0 0.0
      %1817 = vmatmul.mubr.f32.gmra.mxu0 %v688
      %v1818 = vpop.f32.mrf.mxu0
      %v1819 = vadd.f32 0.0, %v1818
      %v1820 = vpop.f32.mrf.mxu0
      %1821 = vmatprep.mubr.f32.mxu0 0.0
      %1822 = vmatmul.mubr.f32.gmra.mxu0 %v691
      %v1823 = vpop.f32.mrf.mxu0
      %v1824 = vadd.f32 0.0, %v1823
      %v1825 = vpop.f32.mrf.mxu0
      %1826 = vmatprep.mubr.f32.mxu0 0.0
      %1827 = vmatmul.mubr.f32.gmra.mxu0 %v694
      %v1828 = vpop.f32.mrf.mxu0
      %v1829 = vadd.f32 0.0, %v1828
      %v1830 = vpop.f32.mrf.mxu0
      %1831 = vmatprep.mubr.f32.mxu0 0.0
      %1832 = vmatmul.mubr.f32.gmra.mxu0 %v697
      %v1833 = vpop.f32.mrf.mxu0
      %v1834 = vadd.f32 0.0, %v1833
      %v1835 = vpop.f32.mrf.mxu0
      %1836 = vmatprep.mubr.f32.mxu0 0.0
      %1837 = vmatmul.mubr.f32.gmra.mxu0 %v700
      %v1838 = vpop.f32.mrf.mxu0
      %v1839 = vadd.f32 0.0, %v1838
      %v1840 = vpop.f32.mrf.mxu0
      %1841 = vmatprep.mubr.f32.mxu0 0.0
      %1842 = vmatmul.mubr.f32.gmra.mxu0 %v703
      %v1843 = vpop.f32.mrf.mxu0
      %v1844 = vadd.f32 0.0, %v1843
      %v1845 = vpop.f32.mrf.mxu0
      %1846 = vmatprep.mubr.f32.mxu0 0.0
      %1847 = vmatmul.mubr.f32.gmra.mxu0 %v706
      %v1848 = vpop.f32.mrf.mxu0
      %v1849 = vadd.f32 0.0, %v1848
      %v1850 = vpop.f32.mrf.mxu0
      %1851 = vmatprep.mubr.f32.mxu0 0.0
      %1852 = vmatmul.mubr.f32.gmra.mxu0 %v709
      %v1853 = vpop.f32.mrf.mxu0
      %v1854 = vadd.f32 0.0, %v1853
      %v1855 = vpop.f32.mrf.mxu0
      %1856 = vmatprep.mubr.f32.mxu0 0.0
      %1857 = vmatmul.mubr.f32.gmra.mxu0 %v712
      %v1858 = vpop.f32.mrf.mxu0
      %v1859 = vadd.f32 0.0, %v1858
      %v1860 = vpop.f32.mrf.mxu0
      %1861 = vmatprep.mubr.f32.mxu0 0.0
      %1862 = vmatmul.mubr.f32.gmra.mxu0 %v715
      %v1863 = vpop.f32.mrf.mxu0
      %v1864 = vadd.f32 0.0, %v1863
      %v1865 = vpop.f32.mrf.mxu0
      %1866 = vmatprep.mubr.f32.mxu0 0.0
      %1867 = vmatmul.mubr.f32.gmra.mxu0 %v718
      %v1868 = vpop.f32.mrf.mxu0
      %v1869 = vadd.f32 0.0, %v1868
      %v1870 = vpop.f32.mrf.mxu0
      %1871 = vmatprep.mubr.f32.mxu0 0.0
      %1872 = vmatmul.mubr.f32.gmra.mxu0 %v721
      %v1873 = vpop.f32.mrf.mxu0
      %v1874 = vadd.f32 0.0, %v1873
      %v1875 = vpop.f32.mrf.mxu0
      %1876 = vdwg.mxu0
      %v1877 = vadd.f32 %v1682, %v1814
      %v1878 = vadd.f32 %v1687, %v1819
      %v1879 = vadd.f32 %v1692, %v1824
      %v1880 = vadd.f32 %v1697, %v1829
      %v1881 = vadd.f32 %v1702, %v1834
      %v1882 = vadd.f32 %v1707, %v1839
      %v1883 = vadd.f32 %v1712, %v1844
      %v1884 = vadd.f32 %v1717, %v1849
      %v1885 = vadd.f32 %v1722, %v1854
      %v1886 = vadd.f32 %v1727, %v1859
      %v1887 = vadd.f32 %v1732, %v1864
      %v1888 = vadd.f32 %v1737, %v1869
      %v1889 = vadd.f32 %v1742, %v1874
      %v1890 = vld [vmem:[%s10] sm:$0xff]
      %v1891 = vld [vmem:[%s10 + $0x8] sm:$0xff]
      %1892 = vmatprep.subr.mxu0 0.0
      %1893 = vmatpush1.msra.mxu0 0.0
      %1894 = vmatprep.subr.mxu0 0.0
      %1895 = vmatpush1.msra.mxu0 0.0
      %1896 = vmatprep.subr.mxu0 0.0
      %1897 = vmatpush1.msra.mxu0 0.0
      %1898 = vmatprep.subr.mxu0 0.0
      %1899 = vmatpush1.msra.mxu0 0.0
      %1900 = vmatprep.subr.mxu0 0.0
      %1901 = vmatpush1.msra.mxu0 0.0
      %1902 = vmatprep.subr.mxu0 0.0
      %1903 = vmatpush1.msra.mxu0 0.0
      %1904 = vmatprep.subr.mxu0 0.0
      %1905 = vmatpush1.msra.mxu0 0.0
      %1906 = vmatprep.subr.mxu0 0.0
      %1907 = vmatpush1.msra.mxu0 0.0
      %1908 = vmatprep.subr.mxu0 0.0
      %1909 = vmatpush1.msra.mxu0 0.0
      %1910 = vmatprep.subr.mxu0 0.0
      %1911 = vmatpush1.msra.mxu0 0.0
      %1912 = vmatprep.subr.mxu0 0.0
      %1913 = vmatpush1.msra.mxu0 0.0
      %1914 = vmatprep.subr.mxu0 0.0
      %1915 = vmatpush1.msra.mxu0 0.0
      %1916 = vmatprep.subr.mxu0 0.0
      %1917 = vmatpush1.msra.mxu0 0.0
      %1918 = vmatprep.subr.mxu0 0.0
      %1919 = vmatpush1.msra.mxu0 0.0
      %1920 = vmatprep.subr.mxu0 0.0
      %1921 = vmatpush1.msra.mxu0 %v1891
      %1922 = vmatprep.subr.mxu0 0.0
      %1923 = vmatpush1.msra.mxu0 %v1890
      %1924 = vmatprep.subr.mxu0 0.0
      %1925 = vmatpush2.msra.mxu0 0.0
      %1926 = vmatprep.subr.mxu0 0.0
      %1927 = vmatpush2.msra.mxu0 0.0
      %1928 = vmatprep.subr.mxu0 0.0
      %1929 = vmatpush2.msra.mxu0 0.0
      %1930 = vmatprep.subr.mxu0 0.0
      %1931 = vmatpush2.msra.mxu0 0.0
      %1932 = vmatprep.subr.mxu0 0.0
      %1933 = vmatpush2.msra.mxu0 0.0
      %1934 = vmatprep.subr.mxu0 0.0
      %1935 = vmatpush2.msra.mxu0 0.0
      %1936 = vmatprep.subr.mxu0 0.0
      %1937 = vmatpush2.msra.mxu0 0.0
      %1938 = vmatprep.subr.mxu0 0.0
      %1939 = vmatpush2.msra.mxu0 0.0
      %1940 = vmatprep.subr.mxu0 0.0
      %1941 = vmatpush2.msra.mxu0 0.0
      %1942 = vmatprep.subr.mxu0 0.0
      %1943 = vmatpush2.msra.mxu0 0.0
      %1944 = vmatprep.subr.mxu0 0.0
      %1945 = vmatpush2.msra.mxu0 0.0
      %1946 = vmatprep.subr.mxu0 0.0
      %1947 = vmatpush2.msra.mxu0 0.0
      %1948 = vmatprep.subr.mxu0 0.0
      %1949 = vmatpush2.msra.mxu0 0.0
      %1950 = vmatprep.subr.mxu0 0.0
      %1951 = vmatpush2.msra.mxu0 0.0
      %1952 = vmatprep.subr.mxu0 0.0
      %1953 = vmatpush2.msra.mxu0 0.0
      %1954 = vmatprep.subr.mxu0 0.0
      %1955 = vmatpush2.msra.mxu0 0.0
      %1956 = vmatprep.mubr.f32.mxu0 0.0
      %1957 = vmatmul.mubr.f32.gmra.mxu0 %v1026
      %v1958 = vpop.f32.mrf.mxu0
      %v1959 = vadd.f32 0.0, %v1958
      %v1960 = vpop.f32.mrf.mxu0
      %1961 = vmatprep.mubr.f32.mxu0 0.0
      %1962 = vmatmul.mubr.f32.gmra.mxu0 %v1029
      %v1963 = vpop.f32.mrf.mxu0
      %v1964 = vadd.f32 0.0, %v1963
      %v1965 = vpop.f32.mrf.mxu0
      %1966 = vmatprep.mubr.f32.mxu0 0.0
      %1967 = vmatmul.mubr.f32.gmra.mxu0 %v1032
      %v1968 = vpop.f32.mrf.mxu0
      %v1969 = vadd.f32 0.0, %v1968
      %v1970 = vpop.f32.mrf.mxu0
      %1971 = vmatprep.mubr.f32.mxu0 0.0
      %1972 = vmatmul.mubr.f32.gmra.mxu0 %v1035
      %v1973 = vpop.f32.mrf.mxu0
      %v1974 = vadd.f32 0.0, %v1973
      %v1975 = vpop.f32.mrf.mxu0
      %1976 = vmatprep.mubr.f32.mxu0 0.0
      %1977 = vmatmul.mubr.f32.gmra.mxu0 %v1038
      %v1978 = vpop.f32.mrf.mxu0
      %v1979 = vadd.f32 0.0, %v1978
      %v1980 = vpop.f32.mrf.mxu0
      %1981 = vmatprep.mubr.f32.mxu0 0.0
      %1982 = vmatmul.mubr.f32.gmra.mxu0 %v1041
      %v1983 = vpop.f32.mrf.mxu0
      %v1984 = vadd.f32 0.0, %v1983
      %v1985 = vpop.f32.mrf.mxu0
      %1986 = vmatprep.mubr.f32.mxu0 0.0
      %1987 = vmatmul.mubr.f32.gmra.mxu0 %v1044
      %v1988 = vpop.f32.mrf.mxu0
      %v1989 = vadd.f32 0.0, %v1988
      %v1990 = vpop.f32.mrf.mxu0
      %1991 = vmatprep.mubr.f32.mxu0 0.0
      %1992 = vmatmul.mubr.f32.gmra.mxu0 %v1047
      %v1993 = vpop.f32.mrf.mxu0
      %v1994 = vadd.f32 0.0, %v1993
      %v1995 = vpop.f32.mrf.mxu0
      %1996 = vmatprep.mubr.f32.mxu0 0.0
      %1997 = vmatmul.mubr.f32.gmra.mxu0 %v1050
      %v1998 = vpop.f32.mrf.mxu0
      %v1999 = vadd.f32 0.0, %v1998
      %v2000 = vpop.f32.mrf.mxu0
      %2001 = vmatprep.mubr.f32.mxu0 0.0
      %2002 = vmatmul.mubr.f32.gmra.mxu0 %v1053
      %v2003 = vpop.f32.mrf.mxu0
      %v2004 = vadd.f32 0.0, %v2003
      %v2005 = vpop.f32.mrf.mxu0
      %2006 = vmatprep.mubr.f32.mxu0 0.0
      %2007 = vmatmul.mubr.f32.gmra.mxu0 %v1056
      %v2008 = vpop.f32.mrf.mxu0
      %v2009 = vadd.f32 0.0, %v2008
      %v2010 = vpop.f32.mrf.mxu0
      %2011 = vmatprep.mubr.f32.mxu0 0.0
      %2012 = vmatmul.mubr.f32.gmra.mxu0 %v1059
      %v2013 = vpop.f32.mrf.mxu0
      %v2014 = vadd.f32 0.0, %v2013
      %v2015 = vpop.f32.mrf.mxu0
      %2016 = vmatprep.mubr.f32.mxu0 0.0
      %2017 = vmatmul.mubr.f32.gmra.mxu0 %v1062
      %v2018 = vpop.f32.mrf.mxu0
      %v2019 = vadd.f32 0.0, %v2018
      %v2020 = vpop.f32.mrf.mxu0
      %2021 = vdwg.mxu0
      %v2022 = vadd.f32 %v1877, %v1959
      %v2023 = vadd.f32 %v1878, %v1964
      %v2024 = vadd.f32 %v1879, %v1969
      %v2025 = vadd.f32 %v1880, %v1974
      %v2026 = vadd.f32 %v1881, %v1979
      %v2027 = vadd.f32 %v1882, %v1984
      %v2028 = vadd.f32 %v1883, %v1989
      %v2029 = vadd.f32 %v1884, %v1994
      %v2030 = vadd.f32 %v1885, %v1999
      %v2031 = vadd.f32 %v1886, %v2004
      %v2032 = vadd.f32 %v1887, %v2009
      %v2033 = vadd.f32 %v1888, %v2014
      %v2034 = vadd.f32 %v1889, %v2019
      %v2035 = vld [vmem:[%s11] sm:$0x1]
      %v2037 = vlaneseq
      %v2038 = vshrl.u32 %v2037, 7
      %v2039 = vsub.s32 0, %v2038
      %v2040 = vrot.slane %v2035, %v2039
      %v2042 = vadd.f32 %v2022, %v2040
      %v2043 = vadd.f32 %v2023, %v2040
      %v2044 = vadd.f32 %v2024, %v2040
      %v2045 = vadd.f32 %v2025, %v2040
      %v2046 = vadd.f32 %v2026, %v2040
      %v2047 = vadd.f32 %v2027, %v2040
      %v2048 = vadd.f32 %v2028, %v2040
      %v2049 = vadd.f32 %v2029, %v2040
      %v2050 = vadd.f32 %v2030, %v2040
      %v2051 = vadd.f32 %v2031, %v2040
      %v2052 = vadd.f32 %v2032, %v2040
      %v2053 = vadd.f32 %v2033, %v2040
      %v2054 = vadd.f32 %v2034, %v2040
      %2055 = vadd.xlane.f32.xlu0 %v2042
      %v2056 = vpop.xlane.xlu0 %2055
      %2057 = vadd.xlane.f32.xlu0 %v2043
      %v2058 = vpop.xlane.xlu0 %2057
      %2059 = vadd.xlane.f32.xlu0 %v2044
      %v2060 = vpop.xlane.xlu0 %2059
      %2061 = vadd.xlane.f32.xlu0 %v2045
      %v2062 = vpop.xlane.xlu0 %2061
      %2063 = vadd.xlane.f32.xlu0 %v2046
      %v2064 = vpop.xlane.xlu0 %2063
      %2065 = vadd.xlane.f32.xlu0 %v2047
      %v2066 = vpop.xlane.xlu0 %2065
      %2067 = vadd.xlane.f32.xlu0 %v2048
      %v2068 = vpop.xlane.xlu0 %2067
      %2069 = vadd.xlane.f32.xlu0 %v2049
      %v2070 = vpop.xlane.xlu0 %2069
      %2071 = vadd.xlane.f32.xlu0 %v2050
      %v2072 = vpop.xlane.xlu0 %2071
      %2073 = vadd.xlane.f32.xlu0 %v2051
      %v2074 = vpop.xlane.xlu0 %2073
      %2075 = vadd.xlane.f32.xlu0 %v2052
      %v2076 = vpop.xlane.xlu0 %2075
      %2077 = vadd.xlane.f32.xlu0 %v2053
      %v2078 = vpop.xlane.xlu0 %2077
      %2079 = vadd.xlane.f32.xlu0 %v2054
      %v2080 = vpop.xlane.xlu0 %2079
      %v2081 = vmul.f32 %v2056, 0.03125
      %v2082 = vmul.f32 %v2058, 0.03125
      %v2083 = vmul.f32 %v2060, 0.03125
      %v2084 = vmul.f32 %v2062, 0.03125
      %v2085 = vmul.f32 %v2064, 0.03125
      %v2086 = vmul.f32 %v2066, 0.03125
      %v2087 = vmul.f32 %v2068, 0.03125
      %v2088 = vmul.f32 %v2070, 0.03125
      %v2089 = vmul.f32 %v2072, 0.03125
      %v2090 = vmul.f32 %v2074, 0.03125
      %v2091 = vmul.f32 %v2076, 0.03125
      %v2092 = vmul.f32 %v2078, 0.03125
      %v2093 = vmul.f32 %v2080, 0.03125
      %v2094 = vmul.f32 %v2042, %v2042
      %v2095 = vmul.f32 %v2043, %v2043
      %v2096 = vmul.f32 %v2044, %v2044
      %v2097 = vmul.f32 %v2045, %v2045
      %v2098 = vmul.f32 %v2046, %v2046
      %v2099 = vmul.f32 %v2047, %v2047
      %v2100 = vmul.f32 %v2048, %v2048
      %v2101 = vmul.f32 %v2049, %v2049
      %v2102 = vmul.f32 %v2050, %v2050
      %v2103 = vmul.f32 %v2051, %v2051
      %v2104 = vmul.f32 %v2052, %v2052
      %v2105 = vmul.f32 %v2053, %v2053
      %v2106 = vmul.f32 %v2054, %v2054
      %2107 = vadd.xlane.f32.xlu0 %v2094
      %v2108 = vpop.xlane.xlu0 %2107
      %2109 = vadd.xlane.f32.xlu0 %v2095
      %v2110 = vpop.xlane.xlu0 %2109
      %2111 = vadd.xlane.f32.xlu0 %v2096
      %v2112 = vpop.xlane.xlu0 %2111
      %2113 = vadd.xlane.f32.xlu0 %v2097
      %v2114 = vpop.xlane.xlu0 %2113
      %2115 = vadd.xlane.f32.xlu0 %v2098
      %v2116 = vpop.xlane.xlu0 %2115
      %2117 = vadd.xlane.f32.xlu0 %v2099
      %v2118 = vpop.xlane.xlu0 %2117
      %2119 = vadd.xlane.f32.xlu0 %v2100
      %v2120 = vpop.xlane.xlu0 %2119
      %2121 = vadd.xlane.f32.xlu0 %v2101
      %v2122 = vpop.xlane.xlu0 %2121
      %2123 = vadd.xlane.f32.xlu0 %v2102
      %v2124 = vpop.xlane.xlu0 %2123
      %2125 = vadd.xlane.f32.xlu0 %v2103
      %v2126 = vpop.xlane.xlu0 %2125
      %2127 = vadd.xlane.f32.xlu0 %v2104
      %v2128 = vpop.xlane.xlu0 %2127
      %2129 = vadd.xlane.f32.xlu0 %v2105
      %v2130 = vpop.xlane.xlu0 %2129
      %2131 = vadd.xlane.f32.xlu0 %v2106
      %v2132 = vpop.xlane.xlu0 %2131
      %v2133 = vmul.f32 %v2108, 0.03125
      %v2134 = vmul.f32 %v2110, 0.03125
      %v2135 = vmul.f32 %v2112, 0.03125
      %v2136 = vmul.f32 %v2114, 0.03125
      %v2137 = vmul.f32 %v2116, 0.03125
      %v2138 = vmul.f32 %v2118, 0.03125
      %v2139 = vmul.f32 %v2120, 0.03125
      %v2140 = vmul.f32 %v2122, 0.03125
      %v2141 = vmul.f32 %v2124, 0.03125
      %v2142 = vmul.f32 %v2126, 0.03125
      %v2143 = vmul.f32 %v2128, 0.03125
      %v2144 = vmul.f32 %v2130, 0.03125
      %v2145 = vmul.f32 %v2132, 0.03125
      %v2146 = vmul.f32 %v2081, %v2081
      %v2147 = vmul.f32 %v2082, %v2082
      %v2148 = vmul.f32 %v2083, %v2083
      %v2149 = vmul.f32 %v2084, %v2084
      %v2150 = vmul.f32 %v2085, %v2085
      %v2151 = vmul.f32 %v2086, %v2086
      %v2152 = vmul.f32 %v2087, %v2087
      %v2153 = vmul.f32 %v2088, %v2088
      %v2154 = vmul.f32 %v2089, %v2089
      %v2155 = vmul.f32 %v2090, %v2090
      %v2156 = vmul.f32 %v2091, %v2091
      %v2157 = vmul.f32 %v2092, %v2092
      %v2158 = vmul.f32 %v2093, %v2093
      %v2159 = vsub.f32 %v2133, %v2146
      %v2160 = vsub.f32 %v2134, %v2147
      %v2161 = vsub.f32 %v2135, %v2148
      %v2162 = vsub.f32 %v2136, %v2149
      %v2163 = vsub.f32 %v2137, %v2150
      %v2164 = vsub.f32 %v2138, %v2151
      %v2165 = vsub.f32 %v2139, %v2152
      %v2166 = vsub.f32 %v2140, %v2153
      %v2167 = vsub.f32 %v2141, %v2154
      %v2168 = vsub.f32 %v2142, %v2155
      %v2169 = vsub.f32 %v2143, %v2156
      %v2170 = vsub.f32 %v2144, %v2157
      %v2171 = vsub.f32 %v2145, %v2158
      %v2172 = vmax.f32 %v2159, 0.0
      %v2173 = vmax.f32 %v2160, 0.0
      %v2174 = vmax.f32 %v2161, 0.0
      %v2175 = vmax.f32 %v2162, 0.0
      %v2176 = vmax.f32 %v2163, 0.0
      %v2177 = vmax.f32 %v2164, 0.0
      %v2178 = vmax.f32 %v2165, 0.0
      %v2179 = vmax.f32 %v2166, 0.0
      %v2180 = vmax.f32 %v2167, 0.0
      %v2181 = vmax.f32 %v2168, 0.0
      %v2182 = vmax.f32 %v2169, 0.0
      %v2183 = vmax.f32 %v2170, 0.0
      %v2184 = vmax.f32 %v2171, 0.0
      %v2185 = vsub.f32 %v2042, %v2081
      %v2186 = vsub.f32 %v2043, %v2082
      %v2187 = vsub.f32 %v2044, %v2083
      %v2188 = vsub.f32 %v2045, %v2084
      %v2189 = vsub.f32 %v2046, %v2085
      %v2190 = vsub.f32 %v2047, %v2086
      %v2191 = vsub.f32 %v2048, %v2087
      %v2192 = vsub.f32 %v2049, %v2088
      %v2193 = vsub.f32 %v2050, %v2089
      %v2194 = vsub.f32 %v2051, %v2090
      %v2195 = vsub.f32 %v2052, %v2091
      %v2196 = vsub.f32 %v2053, %v2092
      %v2197 = vsub.f32 %v2054, %v2093
      %v2198 = vadd.f32 %v2172, 1e-05
      %v2199 = vadd.f32 %v2173, 1e-05
      %v2200 = vadd.f32 %v2174, 1e-05
      %v2201 = vadd.f32 %v2175, 1e-05
      %v2202 = vadd.f32 %v2176, 1e-05
      %v2203 = vadd.f32 %v2177, 1e-05
      %v2204 = vadd.f32 %v2178, 1e-05
      %v2205 = vadd.f32 %v2179, 1e-05
      %v2206 = vadd.f32 %v2180, 1e-05
      %v2207 = vadd.f32 %v2181, 1e-05
      %v2208 = vadd.f32 %v2182, 1e-05
      %v2209 = vadd.f32 %v2183, 1e-05
      %v2210 = vadd.f32 %v2184, 1e-05
      %v2211 = vrsqrt.pop %v2198
      %v2212 = vrsqrt.pop %v2199
      %v2213 = vrsqrt.pop %v2200
      %v2214 = vrsqrt.pop %v2201
      %v2215 = vrsqrt.pop %v2202
      %v2216 = vrsqrt.pop %v2203
      %v2217 = vrsqrt.pop %v2204
      %v2218 = vrsqrt.pop %v2205
      %v2219 = vrsqrt.pop %v2206
      %v2220 = vrsqrt.pop %v2207
      %v2221 = vrsqrt.pop %v2208
      %v2222 = vrsqrt.pop %v2209
      %v2223 = vrsqrt.pop %v2210
      %v2224 = vmul.f32 %v2185, %v2211
      %v2225 = vmul.f32 %v2186, %v2212
      %v2226 = vmul.f32 %v2187, %v2213
      %v2227 = vmul.f32 %v2188, %v2214
      %v2228 = vmul.f32 %v2189, %v2215
      %v2229 = vmul.f32 %v2190, %v2216
      %v2230 = vmul.f32 %v2191, %v2217
      %v2231 = vmul.f32 %v2192, %v2218
      %v2232 = vmul.f32 %v2193, %v2219
      %v2233 = vmul.f32 %v2194, %v2220
      %v2234 = vmul.f32 %v2195, %v2221
      %v2235 = vmul.f32 %v2196, %v2222
      %v2236 = vmul.f32 %v2197, %v2223
      %v2237 = vld [vmem:[%s12] sm:$0x1]
      %v2239 = vlaneseq
      %v2240 = vshrl.u32 %v2239, 7
      %v2241 = vsub.s32 0, %v2240
      %v2242 = vrot.slane %v2237, %v2241
      %v2244 = vmul.f32 %v2224, %v2242
      %v2245 = vmul.f32 %v2225, %v2242
      %v2246 = vmul.f32 %v2226, %v2242
      %v2247 = vmul.f32 %v2227, %v2242
      %v2248 = vmul.f32 %v2228, %v2242
      %v2249 = vmul.f32 %v2229, %v2242
      %v2250 = vmul.f32 %v2230, %v2242
      %v2251 = vmul.f32 %v2231, %v2242
      %v2252 = vmul.f32 %v2232, %v2242
      %v2253 = vmul.f32 %v2233, %v2242
      %v2254 = vmul.f32 %v2234, %v2242
      %v2255 = vmul.f32 %v2235, %v2242
      %v2256 = vmul.f32 %v2236, %v2242
      %v2257 = vld [vmem:[%s13] sm:$0x1]
      %v2259 = vlaneseq
      %v2260 = vshrl.u32 %v2259, 7
      %v2261 = vsub.s32 0, %v2260
      %v2262 = vrot.slane %v2257, %v2261
      %v2264 = vadd.f32 %v2244, %v2262
      %v2265 = vadd.f32 %v2245, %v2262
      %v2266 = vadd.f32 %v2246, %v2262
      %v2267 = vadd.f32 %v2247, %v2262
      %v2268 = vadd.f32 %v2248, %v2262
      %v2269 = vadd.f32 %v2249, %v2262
      %v2270 = vadd.f32 %v2250, %v2262
      %v2271 = vadd.f32 %v2251, %v2262
      %v2272 = vadd.f32 %v2252, %v2262
      %v2273 = vadd.f32 %v2253, %v2262
      %v2274 = vadd.f32 %v2254, %v2262
      %v2275 = vadd.f32 %v2255, %v2262
      %v2276 = vadd.f32 %v2256, %v2262
      %2277 = vst [vmem:[%s491] sm:$0xff] %v2264
      %2278 = vst [vmem:[%s491 + $0x8] sm:$0xff] %v2265
      %2279 = vst [vmem:[%s491 + $0x10] sm:$0xff] %v2266
      %2280 = vst [vmem:[%s491 + $0x18] sm:$0xff] %v2267
      %2281 = vst [vmem:[%s491 + $0x20] sm:$0xff] %v2268
      %2282 = vst [vmem:[%s491 + $0x28] sm:$0xff] %v2269
      %2283 = vst [vmem:[%s491 + $0x30] sm:$0xff] %v2270
      %2284 = vst [vmem:[%s491 + $0x38] sm:$0xff] %v2271
      %2285 = vst [vmem:[%s491 + $0x40] sm:$0xff] %v2272
      %2286 = vst [vmem:[%s491 + $0x48] sm:$0xff] %v2273
      %2287 = vst [vmem:[%s491 + $0x50] sm:$0xff] %v2274
      %2288 = vst [vmem:[%s491 + $0x58] sm:$0xff] %v2275
      %2289 = vst [vmem:[%s491 + $0x60] sm:$0xff] %v2276
      %s2290 = smul.u32 13, %s25
      %p2291 = scmp.lt.s32.totalorder %s2290, 25
      %s2292 = scalar_select %p2291, %s2290, 25
      %s2293 = smul.addr %s2292, 8
      %s2294 = scalar_lea.vmem %s14, %s2293
      // Predicated region
      $region77: #{edge_transition_forward.1} parent=75 // pred_check
        %p2295 = pneg %p347
      $region78: #{edge_transition_forward.1} parent=75 // pred_check_branch
        %2297 = sbr.rel (%p2295) target = $region80
      $region79: #{edge_transition_forward.1} parent=75 // pred_region
        %s2298 = smul.u32 13, %s25
      $region80: #{edge_transition_forward.1} parent=75 // pred_fallthru
        _
    $region76: #{edge_transition_forward.1} parent=5 // pred_fallthru
      _
    %p2299 = scmp.le.s32.totalorder 2, %s20
    // Predicated region
    $region81: #{edge_transition_forward.1} parent=5 // pred_check
      %p2300 = pneg %p2299
    $region82: #{edge_transition_forward.1} parent=5 // pred_check_branch
      %2302 = sbr.rel (%p2300) target = $region84
    $region83: #{edge_transition_forward.1} parent=5 // pred_region
      %s2303 = ssub.s32 %s20, 2
      // Predicated region
      $region85: #{edge_transition_forward.1} parent=83 // pred_check
        %p2304 = pneg %p353
      $region86: #{edge_transition_forward.1} parent=83 // pred_check_branch
        %2306 = sbr.rel (%p2304) target = $region88
      $region87: #{edge_transition_forward.1} parent=83 // pred_region
        %s2307 = smul.u32 13, %s26
        %p2308 = scmp.lt.s32.totalorder %s2307, 25
        %s2309 = scalar_select %p2308, %s2307, 25
        %s2310 = smul.addr %s2309, 8
        %s2311 = scalar_lea.vmem %s14, %s2310
      $region88: #{edge_transition_forward.1} parent=83 // pred_fallthru
        _
    $region84: #{edge_transition_forward.1} parent=5 // pred_fallthru
      _
  $region6: #{edge_transition_forward.1} parent=0 // loop_footer
    %s24 = sadd.s32 1, %s20
  $region7: #{edge_transition_forward.1} parent=0 // loop_footer_branch
    %19 = sbr.rel target = $region3
  $region8: #{edge_transition_forward.1} parent=0 // loop_exit
    _

</llo_original>
